<compile_context>
chip_gen: v5e
topology: v5e:2x2
jax: 0.10.0
libtpu: 0.0.40
codegen_flags: <defaults>
</compile_context>

<pallas_src>
import math
import functools

import jax
import jax.numpy as jnp
from jax.experimental import pallas as pl
from jax.experimental.pallas import tpu as pltpu

LN_EPS = 1e-12  # HF BERT layer_norm_eps


# ----------------------------- fused Pallas kernel ------------------------------ #

def _bert_fused_kernel(
        emb_ref, mask_ref, eg_ref, eb_ref,
        wqkv_ref, bqkv_ref, wo_ref, bo_ref, g1_ref, b1_ref,
        wi_ref, bi_ref, wo2_ref, bo2_ref, g2_ref, b2_ref,
        pw_ref, pb_ref, cw_ref, cb_ref,
        o_ref, *, num_layers, num_heads, eps, scale):
    """Full BERT encoder + pooler + classifier for ONE batch element."""
    S, H = emb_ref.shape[1], emb_ref.shape[2]
    dH = H // num_heads

    def mm(a, w):
        # bf16 MXU operands, f32 accumulation.
        return jax.lax.dot_general(
            a.astype(jnp.bfloat16), w.astype(jnp.bfloat16),
            (((1,), (0,)), ((), ())),
            preferred_element_type=jnp.float32)

    def ln(x, g, b):
        mu = jnp.mean(x, axis=-1, keepdims=True)
        var = jnp.mean(jnp.square(x - mu), axis=-1, keepdims=True)
        return (x - mu) * jax.lax.rsqrt(var + eps) * g + b

    # Embeddings were summed in the wrapper; LayerNorm them here (dropout = identity).
    x = ln(emb_ref[0].astype(jnp.float32), eg_ref[...], eb_ref[...])       # (S, H)

    # Additive attention bias from the raw mask: (1 - m) * -10000, broadcast over
    # query rows and heads (bias is along the key axis).
    bias = (1.0 - mask_ref[0].astype(jnp.float32)) * -10000.0              # (1, S)

    for l in range(num_layers):
        # ---- self-attention (fused QKV, in-register head split) ----
        qkv = mm(x, wqkv_ref[l]) + bqkv_ref[l]                             # (S, 3H)
        wo_l = wo_ref[l]                                                   # (H, H) bf16
        attn = None
        for h in range(num_heads):
            qh = qkv[:, h * dH:(h + 1) * dH]                               # (S, dH)
            kh = qkv[:, H + h * dH:H + (h + 1) * dH]
            vh = qkv[:, 2 * H + h * dH:2 * H + (h + 1) * dH]
            s = jax.lax.dot_general(                                       # q @ k^T
                qh.astype(jnp.bfloat16), kh.astype(jnp.bfloat16),
                (((1,), (1,)), ((), ())),
                preferred_element_type=jnp.float32) * scale + bias         # (S, S)
            s = s - jnp.max(s, axis=-1, keepdims=True)
            p = jnp.exp(s)
            p = p * pl.reciprocal(jnp.sum(p, axis=-1, keepdims=True), approx=True)
            ctx_h = mm(p, vh)                                              # (S, dH)
            # ctx @ Wo == sum_h ctx_h @ Wo[h*dH:(h+1)*dH, :]  (avoids concat/transpose)
            part = mm(ctx_h, wo_l[h * dH:(h + 1) * dH, :])                 # (S, H)
            attn = part if attn is None else attn + part
        attn = attn + bo_ref[l]
        x = ln(attn + x, g1_ref[l], b1_ref[l])

        # ---- feed-forward (exact erf GELU, matching HF hidden_act="gelu") ----
        hmid = mm(x, wi_ref[l]) + bi_ref[l]                                # (S, I)
        hmid = 0.5 * hmid * (1.0 + jax.lax.erf(hmid * (1.0 / math.sqrt(2.0))))
        ff = mm(hmid, wo2_ref[l]) + bo2_ref[l]                             # (S, H)
        x = ln(ff + x, g2_ref[l], b2_ref[l])

    # ---- BERT pooler ([CLS] row -> dense -> tanh) + classification head ----
    cls = x[0:1, :]                                                        # (1, H)
    pooled = jnp.tanh(mm(cls, pw_ref[...]) + pb_ref[...])                  # (1, H)
    logits = mm(pooled, cw_ref[...]) + cb_ref[...]                         # (1, 2)
    o_ref[0] = logits.astype(o_ref.dtype)


# ----------------------------- parameters ------------------------------ #

def init_params(key, *, vocab=100, hidden=32, num_heads=2, num_layers=2,
                intermediate=64, max_pos=16):
    keys = iter(jax.random.split(key, 64))

    def w(shape, scale=0.02):
        return jax.random.normal(next(keys), shape, jnp.float32) * scale

    params = {
        "num_heads": num_heads,
        "word_emb": w((vocab, hidden)),
        "pos_emb": w((max_pos, hidden)),
        "type_emb": w((2, hidden)),
        "emb_ln_g": jnp.ones((hidden,), jnp.float32),
        "emb_ln_b": jnp.zeros((hidden,), jnp.float32),
        "layers": [],
        "pool_w": w((hidden, hidden)),
        "pool_b": jnp.zeros((hidden,), jnp.float32),
        "cls_w": w((hidden, 2)),
        "cls_b": jnp.zeros((2,), jnp.float32),
    }
    for _ in range(num_layers):
        params["layers"].append({
            "wq": w((hidden, hidden)), "bq": jnp.zeros((hidden,), jnp.float32),
            "wk": w((hidden, hidden)), "bk": jnp.zeros((hidden,), jnp.float32),
            "wv": w((hidden, hidden)), "bv": jnp.zeros((hidden,), jnp.float32),
            "wo": w((hidden, hidden)), "bo": jnp.zeros((hidden,), jnp.float32),
            "ln1_g": jnp.ones((hidden,), jnp.float32),
            "ln1_b": jnp.zeros((hidden,), jnp.float32),
            "wi": w((hidden, intermediate)), "bi": jnp.zeros((intermediate,), jnp.float32),
            "wo2": w((intermediate, hidden)), "bo2": jnp.zeros((hidden,), jnp.float32),
            "ln2_g": jnp.ones((hidden,), jnp.float32),
            "ln2_b": jnp.zeros((hidden,), jnp.float32),
        })
    return params


# ----------------------------- model wrapper ------------------------------ #

def bert_model_forward(params, input_ids, attention_mask):
    """Equivalent of BertModel.forward: BERT encoder -> pooler_output -> dense(2)."""
    B, S = input_ids.shape
    H = params["word_emb"].shape[1]
    nH = params["num_heads"]
    layers = params["layers"]
    L = len(layers)
    I = layers[0]["wi"].shape[1]
    dH = H // nH
    bf16 = jnp.bfloat16

    # TODO(synk): the embedding table gather stays in XLA (jnp.take); a Pallas DMA-gather
    # is not worthwhile at this table size.
    we = jnp.take(params["word_emb"], input_ids, axis=0)                   # [B, S, H]
    emb = we + params["pos_emb"][:S][None, :, :] + params["type_emb"][0][None, None, :]

    # Stack per-layer weights so the kernel indexes them with a static layer id; matmul
    # weights are pre-cast to bf16 (halves weight DMA, MXU-native on v6e/v7x).
    def stack(name):
        return jnp.stack([lyr[name] for lyr in layers])

    wqkv = jnp.stack([jnp.concatenate([l["wq"], l["wk"], l["wv"]], axis=1)
                      for l in layers]).astype(bf16)                       # [L, H, 3H]
    bqkv = jnp.stack([jnp.concatenate([l["bq"], l["bk"], l["bv"]])
                      for l in layers]).reshape(L, 1, 3 * H)               # [L, 1, 3H]
    wo = stack("wo").astype(bf16)                                          # [L, H, H]
    bo = stack("bo").reshape(L, 1, H)
    g1 = stack("ln1_g").reshape(L, 1, H)
    b1 = stack("ln1_b").reshape(L, 1, H)
    wi = stack("wi").astype(bf16)                                          # [L, H, I]
    bi = stack("bi").reshape(L, 1, I)
    wo2 = stack("wo2").astype(bf16)                                        # [L, I, H]
    bo2 = stack("bo2").reshape(L, 1, H)
    g2 = stack("ln2_g").reshape(L, 1, H)
    b2 = stack("ln2_b").reshape(L, 1, H)

    def rep(shape):   # whole array resident in VMEM; same block every grid step
        nd = len(shape)
        return pl.BlockSpec(shape, lambda b, _nd=nd: (0,) * _nd)

    in_specs = [
        pl.BlockSpec((1, S, H), lambda b: (b, 0, 0)),      # summed embeddings (per batch)
        pl.BlockSpec((1, 1, S), lambda b: (b, 0, 0)),      # raw attention mask (per batch)
        rep((1, H)), rep((1, H)),                          # embedding LayerNorm
        rep((L, H, 3 * H)), rep((L, 1, 3 * H)),            # fused QKV proj
        rep((L, H, H)), rep((L, 1, H)),                    # attention output proj
        rep((L, 1, H)), rep((L, 1, H)),                    # LN1
        rep((L, H, I)), rep((L, 1, I)),                    # FFN in
        rep((L, I, H)), rep((L, 1, H)),                    # FFN out
        rep((L, 1, H)), rep((L, 1, H)),                    # LN2
        rep((H, H)), rep((1, H)),                          # pooler
        rep((H, 2)), rep((1, 2)),                          # classifier
    ]

    logits = pl.pallas_call(
        functools.partial(_bert_fused_kernel, num_layers=L, num_heads=nH,
                          eps=LN_EPS, scale=1.0 / math.sqrt(dH)),
        out_shape=jax.ShapeDtypeStruct((B, 1, 2), jnp.float32),
        grid=(B,),
        in_specs=in_specs,
        out_specs=pl.BlockSpec((1, 1, 2), lambda b: (b, 0, 0)),
        compiler_params=pltpu.CompilerParams(
            dimension_semantics=("parallel",)),   # lets v7x split the batch over 2 TCs
    )(emb, attention_mask.astype(jnp.float32).reshape(B, 1, S),
      params["emb_ln_g"].reshape(1, H), params["emb_ln_b"].reshape(1, H),
      wqkv, bqkv, wo, bo, g1, b1, wi, bi, wo2, bo2, g2, b2,
      params["pool_w"].astype(bf16), params["pool_b"].reshape(1, H),
      params["cls_w"].astype(bf16), params["cls_b"].reshape(1, 2))

    return logits.reshape(B, 2)


if __name__ == "__main__":
    key = jax.random.PRNGKey(0)
    k_param, k_ids = jax.random.split(key)

    B, S = 2, 8
    params = init_params(k_param, vocab=100, hidden=32, num_heads=2,
                         num_layers=2, intermediate=64, max_pos=16)

    input_ids = jax.random.randint(k_ids, (B, S), 0, 100, dtype=jnp.int32)
    attention_mask = jnp.array([[1, 1, 1, 1, 1, 1, 1, 1],
                                [1, 1, 1, 1, 1, 0, 0, 0]], dtype=jnp.float32)

    logits = bert_model_forward(params, input_ids, attention_mask)
    jax.block_until_ready(logits)
    assert logits.shape == (B, 2) and logits.dtype == jnp.float32
    print("KERNEL_OK")
</pallas_src>

<mosaic_0001>
module attributes {stable_mosaic.version = 11 : i64} {
  func.func @_bert_fused_kernel(%arg0: i32, %arg1: memref<1x8x32xf32, #tpu.memory_space<vmem>>, %arg2: memref<1x1x8xf32, #tpu.memory_space<vmem>>, %arg3: memref<1x32xf32, #tpu.memory_space<vmem>>, %arg4: memref<1x32xf32, #tpu.memory_space<vmem>>, %arg5: memref<2x32x96xbf16, #tpu.memory_space<vmem>>, %arg6: memref<2x1x96xf32, #tpu.memory_space<vmem>>, %arg7: memref<2x32x32xbf16, #tpu.memory_space<vmem>>, %arg8: memref<2x1x32xf32, #tpu.memory_space<vmem>>, %arg9: memref<2x1x32xf32, #tpu.memory_space<vmem>>, %arg10: memref<2x1x32xf32, #tpu.memory_space<vmem>>, %arg11: memref<2x32x64xbf16, #tpu.memory_space<vmem>>, %arg12: memref<2x1x64xf32, #tpu.memory_space<vmem>>, %arg13: memref<2x64x32xbf16, #tpu.memory_space<vmem>>, %arg14: memref<2x1x32xf32, #tpu.memory_space<vmem>>, %arg15: memref<2x1x32xf32, #tpu.memory_space<vmem>>, %arg16: memref<2x1x32xf32, #tpu.memory_space<vmem>>, %arg17: memref<32x32xbf16, #tpu.memory_space<vmem>>, %arg18: memref<1x32xf32, #tpu.memory_space<vmem>>, %arg19: memref<32x2xbf16, #tpu.memory_space<vmem>>, %arg20: memref<1x2xf32, #tpu.memory_space<vmem>>, %arg21: memref<1x1x2xf32, #tpu.memory_space<vmem>>) attributes {dimension_semantics = [#tpu.dimension_semantics<parallel>], iteration_bounds = array<i64: 2>, scalar_prefetch = 0 : i64, scratch_operands = 0 : i64, tpu.core_type = #tpu.core_type<tc>, window_params = [{transform_indices = @transform_0, window_bounds = array<i64: 1, 8, 32>}, {transform_indices = @transform_1, window_bounds = array<i64: 1, 1, 8>}, {pipeline_mode = #tpu.pipeline_mode<synchronous>, transform_indices = @transform_2, window_bounds = array<i64: 1, 32>}, {pipeline_mode = #tpu.pipeline_mode<synchronous>, transform_indices = @transform_3, window_bounds = array<i64: 1, 32>}, {pipeline_mode = #tpu.pipeline_mode<synchronous>, transform_indices = @transform_4, window_bounds = array<i64: 2, 32, 96>}, {pipeline_mode = #tpu.pipeline_mode<synchronous>, transform_indices = @transform_5, window_bounds = array<i64: 2, 1, 96>}, {pipeline_mode = #tpu.pipeline_mode<synchronous>, transform_indices = @transform_6, window_bounds = array<i64: 2, 32, 32>}, {pipeline_mode = #tpu.pipeline_mode<synchronous>, transform_indices = @transform_7, window_bounds = array<i64: 2, 1, 32>}, {pipeline_mode = #tpu.pipeline_mode<synchronous>, transform_indices = @transform_8, window_bounds = array<i64: 2, 1, 32>}, {pipeline_mode = #tpu.pipeline_mode<synchronous>, transform_indices = @transform_9, window_bounds = array<i64: 2, 1, 32>}, {pipeline_mode = #tpu.pipeline_mode<synchronous>, transform_indices = @transform_10, window_bounds = array<i64: 2, 32, 64>}, {pipeline_mode = #tpu.pipeline_mode<synchronous>, transform_indices = @transform_11, window_bounds = array<i64: 2, 1, 64>}, {pipeline_mode = #tpu.pipeline_mode<synchronous>, transform_indices = @transform_12, window_bounds = array<i64: 2, 64, 32>}, {pipeline_mode = #tpu.pipeline_mode<synchronous>, transform_indices = @transform_13, window_bounds = array<i64: 2, 1, 32>}, {pipeline_mode = #tpu.pipeline_mode<synchronous>, transform_indices = @transform_14, window_bounds = array<i64: 2, 1, 32>}, {pipeline_mode = #tpu.pipeline_mode<synchronous>, transform_indices = @transform_15, window_bounds = array<i64: 2, 1, 32>}, {pipeline_mode = #tpu.pipeline_mode<synchronous>, transform_indices = @transform_16, window_bounds = array<i64: 32, 32>}, {pipeline_mode = #tpu.pipeline_mode<synchronous>, transform_indices = @transform_17, window_bounds = array<i64: 1, 32>}, {pipeline_mode = #tpu.pipeline_mode<synchronous>, transform_indices = @transform_18, window_bounds = array<i64: 32, 2>}, {pipeline_mode = #tpu.pipeline_mode<synchronous>, transform_indices = @transform_19, window_bounds = array<i64: 1, 2>}, {transform_indices = @transform_20, window_bounds = array<i64: 1, 1, 2>}]} {
    %c0 = arith.constant 0 : index
    %c0_0 = arith.constant 0 : index
    %c0_1 = arith.constant 0 : index
    %0 = vector.load %arg1[%c0, %c0_0, %c0_1] : memref<1x8x32xf32, #tpu.memory_space<vmem>>, vector<1x8x32xf32>
    %1 = vector.shape_cast %0 : vector<1x8x32xf32> to vector<8x32xf32>
    %c0_2 = arith.constant 0 : index
    %c0_3 = arith.constant 0 : index
    %2 = vector.load %arg3[%c0_2, %c0_3] : memref<1x32xf32, #tpu.memory_space<vmem>>, vector<1x32xf32>
    %c0_4 = arith.constant 0 : index
    %c0_5 = arith.constant 0 : index
    %3 = vector.load %arg4[%c0_4, %c0_5] : memref<1x32xf32, #tpu.memory_space<vmem>>, vector<1x32xf32>
    %cst = arith.constant dense<0.000000e+00> : vector<8xf32>
    %4 = vector.multi_reduction <add>, %1, %cst [1] : vector<8x32xf32> to vector<8xf32>
    %5 = vector.shape_cast %4 : vector<8xf32> to vector<8x1xf32>
    %cst_6 = arith.constant 3.200000e+01 : f32
    %6 = vector.broadcast %cst_6 : f32 to vector<8x1xf32>
    %7 = arith.divf %5, %6 : vector<8x1xf32>
    %8 = vector.broadcast %7 : vector<8x1xf32> to vector<8x32xf32>
    %9 = arith.subf %1, %8 : vector<8x32xf32>
    %10 = arith.mulf %9, %9 : vector<8x32xf32>
    %cst_7 = arith.constant dense<0.000000e+00> : vector<8xf32>
    %11 = vector.multi_reduction <add>, %10, %cst_7 [1] : vector<8x32xf32> to vector<8xf32>
    %12 = vector.shape_cast %11 : vector<8xf32> to vector<8x1xf32>
    %cst_8 = arith.constant 3.200000e+01 : f32
    %13 = vector.broadcast %cst_8 : f32 to vector<8x1xf32>
    %14 = arith.divf %12, %13 : vector<8x1xf32>
    %15 = vector.broadcast %7 : vector<8x1xf32> to vector<8x32xf32>
    %16 = arith.subf %1, %15 : vector<8x32xf32>
    %cst_9 = arith.constant 9.99999996E-13 : f32
    %17 = vector.broadcast %cst_9 : f32 to vector<8x1xf32>
    %18 = arith.addf %14, %17 : vector<8x1xf32>
    %19 = math.rsqrt %18 : vector<8x1xf32>
    %20 = vector.broadcast %19 : vector<8x1xf32> to vector<8x32xf32>
    %21 = arith.mulf %16, %20 : vector<8x32xf32>
    %22 = vector.broadcast %2 : vector<1x32xf32> to vector<8x32xf32>
    %23 = arith.mulf %21, %22 : vector<8x32xf32>
    %24 = vector.broadcast %3 : vector<1x32xf32> to vector<8x32xf32>
    %25 = arith.addf %23, %24 : vector<8x32xf32>
    %c0_10 = arith.constant 0 : index
    %c0_11 = arith.constant 0 : index
    %c0_12 = arith.constant 0 : index
    %26 = vector.load %arg2[%c0_10, %c0_11, %c0_12] : memref<1x1x8xf32, #tpu.memory_space<vmem>>, vector<1x1x8xf32>
    %27 = vector.shape_cast %26 : vector<1x1x8xf32> to vector<1x8xf32>
    %cst_13 = arith.constant 1.000000e+00 : f32
    %28 = vector.broadcast %cst_13 : f32 to vector<1x8xf32>
    %29 = arith.subf %28, %27 : vector<1x8xf32>
    %cst_14 = arith.constant -1.000000e+04 : f32
    %30 = vector.broadcast %cst_14 : f32 to vector<1x8xf32>
    %31 = arith.mulf %29, %30 : vector<1x8xf32>
    %c0_15 = arith.constant 0 : index
    %c0_16 = arith.constant 0 : index
    %c0_17 = arith.constant 0 : index
    %32 = vector.load %arg5[%c0_15, %c0_16, %c0_17] : memref<2x32x96xbf16, #tpu.memory_space<vmem>>, vector<1x32x96xbf16>
    %33 = vector.shape_cast %32 : vector<1x32x96xbf16> to vector<32x96xbf16>
    %34 = arith.truncf %25 : vector<8x32xf32> to vector<8x32xbf16>
    %cst_18 = arith.constant dense<0.000000e+00> : vector<8x96xf32>
    %35 = tpu.matmul %34, %33, %cst_18 {dimension_numbers = #tpu.dot_dimension_numbers<[1], [0], [0], [1], [0, 0, 1, 1], [], []>} : vector<8x32xbf16>, vector<32x96xbf16>, vector<8x96xf32> -> vector<8x96xf32>
    %c0_19 = arith.constant 0 : index
    %c0_20 = arith.constant 0 : index
    %c0_21 = arith.constant 0 : index
    %36 = vector.load %arg6[%c0_19, %c0_20, %c0_21] : memref<2x1x96xf32, #tpu.memory_space<vmem>>, vector<1x1x96xf32>
    %37 = vector.shape_cast %36 : vector<1x1x96xf32> to vector<1x96xf32>
    %38 = vector.broadcast %37 : vector<1x96xf32> to vector<8x96xf32>
    %39 = arith.addf %35, %38 : vector<8x96xf32>
    %c0_22 = arith.constant 0 : index
    %c0_23 = arith.constant 0 : index
    %c0_24 = arith.constant 0 : index
    %40 = vector.load %arg7[%c0_22, %c0_23, %c0_24] : memref<2x32x32xbf16, #tpu.memory_space<vmem>>, vector<1x32x32xbf16>
    %41 = vector.shape_cast %40 : vector<1x32x32xbf16> to vector<32x32xbf16>
    %42 = vector.extract_strided_slice %39 {offsets = [0, 0], sizes = [8, 16], strides = [1, 1]} : vector<8x96xf32> to vector<8x16xf32>
    %43 = vector.extract_strided_slice %39 {offsets = [0, 32], sizes = [8, 16], strides = [1, 1]} : vector<8x96xf32> to vector<8x16xf32>
    %44 = vector.extract_strided_slice %39 {offsets = [0, 64], sizes = [8, 16], strides = [1, 1]} : vector<8x96xf32> to vector<8x16xf32>
    %45 = arith.truncf %42 : vector<8x16xf32> to vector<8x16xbf16>
    %46 = arith.truncf %43 : vector<8x16xf32> to vector<8x16xbf16>
    %cst_25 = arith.constant dense<0.000000e+00> : vector<8x8xf32>
    %47 = tpu.matmul %45, %46, %cst_25 {dimension_numbers = #tpu.dot_dimension_numbers<[1], [1], [0], [0], [0, 0, 1, 0], [], []>} : vector<8x16xbf16>, vector<8x16xbf16>, vector<8x8xf32> -> vector<8x8xf32>
    %cst_26 = arith.constant 2.500000e-01 : f32
    %48 = vector.broadcast %cst_26 : f32 to vector<8x8xf32>
    %49 = arith.mulf %47, %48 : vector<8x8xf32>
    %50 = vector.broadcast %31 : vector<1x8xf32> to vector<8x8xf32>
    %51 = arith.addf %49, %50 : vector<8x8xf32>
    %cst_27 = arith.constant dense<0xFF800000> : vector<8xf32>
    %52 = vector.multi_reduction <maximumf>, %51, %cst_27 [1] : vector<8x8xf32> to vector<8xf32>
    %53 = vector.shape_cast %52 : vector<8xf32> to vector<8x1xf32>
    %54 = vector.broadcast %53 : vector<8x1xf32> to vector<8x8xf32>
    %55 = arith.subf %51, %54 : vector<8x8xf32>
    %56 = math.exp %55 : vector<8x8xf32>
    %cst_28 = arith.constant dense<0.000000e+00> : vector<8xf32>
    %57 = vector.multi_reduction <add>, %56, %cst_28 [1] : vector<8x8xf32> to vector<8xf32>
    %58 = vector.shape_cast %57 : vector<8xf32> to vector<8x1xf32>
    %59 = tpu.reciprocal %58 {approx = true} : vector<8x1xf32> -> vector<8x1xf32>
    %60 = vector.broadcast %59 : vector<8x1xf32> to vector<8x8xf32>
    %61 = arith.mulf %56, %60 : vector<8x8xf32>
    %62 = arith.truncf %61 : vector<8x8xf32> to vector<8x8xbf16>
    %63 = arith.truncf %44 : vector<8x16xf32> to vector<8x16xbf16>
    %cst_29 = arith.constant dense<0.000000e+00> : vector<8x16xf32>
    %64 = tpu.matmul %62, %63, %cst_29 {dimension_numbers = #tpu.dot_dimension_numbers<[1], [0], [0], [1], [0, 0, 1, 1], [], []>} : vector<8x8xbf16>, vector<8x16xbf16>, vector<8x16xf32> -> vector<8x16xf32>
    %65 = vector.extract_strided_slice %41 {offsets = [0, 0], sizes = [16, 32], strides = [1, 1]} : vector<32x32xbf16> to vector<16x32xbf16>
    %66 = arith.truncf %64 : vector<8x16xf32> to vector<8x16xbf16>
    %cst_30 = arith.constant dense<0.000000e+00> : vector<8x32xf32>
    %67 = tpu.matmul %66, %65, %cst_30 {dimension_numbers = #tpu.dot_dimension_numbers<[1], [0], [0], [1], [0, 0, 1, 1], [], []>} : vector<8x16xbf16>, vector<16x32xbf16>, vector<8x32xf32> -> vector<8x32xf32>
    %68 = vector.extract_strided_slice %39 {offsets = [0, 16], sizes = [8, 16], strides = [1, 1]} : vector<8x96xf32> to vector<8x16xf32>
    %69 = vector.extract_strided_slice %39 {offsets = [0, 48], sizes = [8, 16], strides = [1, 1]} : vector<8x96xf32> to vector<8x16xf32>
    %70 = vector.extract_strided_slice %39 {offsets = [0, 80], sizes = [8, 16], strides = [1, 1]} : vector<8x96xf32> to vector<8x16xf32>
    %71 = arith.truncf %68 : vector<8x16xf32> to vector<8x16xbf16>
    %72 = arith.truncf %69 : vector<8x16xf32> to vector<8x16xbf16>
    %cst_31 = arith.constant dense<0.000000e+00> : vector<8x8xf32>
    %73 = tpu.matmul %71, %72, %cst_31 {dimension_numbers = #tpu.dot_dimension_numbers<[1], [1], [0], [0], [0, 0, 1, 0], [], []>} : vector<8x16xbf16>, vector<8x16xbf16>, vector<8x8xf32> -> vector<8x8xf32>
    %cst_32 = arith.constant 2.500000e-01 : f32
    %74 = vector.broadcast %cst_32 : f32 to vector<8x8xf32>
    %75 = arith.mulf %73, %74 : vector<8x8xf32>
    %76 = vector.broadcast %31 : vector<1x8xf32> to vector<8x8xf32>
    %77 = arith.addf %75, %76 : vector<8x8xf32>
    %cst_33 = arith.constant dense<0xFF800000> : vector<8xf32>
    %78 = vector.multi_reduction <maximumf>, %77, %cst_33 [1] : vector<8x8xf32> to vector<8xf32>
    %79 = vector.shape_cast %78 : vector<8xf32> to vector<8x1xf32>
    %80 = vector.broadcast %79 : vector<8x1xf32> to vector<8x8xf32>
    %81 = arith.subf %77, %80 : vector<8x8xf32>
    %82 = math.exp %81 : vector<8x8xf32>
    %cst_34 = arith.constant dense<0.000000e+00> : vector<8xf32>
    %83 = vector.multi_reduction <add>, %82, %cst_34 [1] : vector<8x8xf32> to vector<8xf32>
    %84 = vector.shape_cast %83 : vector<8xf32> to vector<8x1xf32>
    %85 = tpu.reciprocal %84 {approx = true} : vector<8x1xf32> -> vector<8x1xf32>
    %86 = vector.broadcast %85 : vector<8x1xf32> to vector<8x8xf32>
    %87 = arith.mulf %82, %86 : vector<8x8xf32>
    %88 = arith.truncf %87 : vector<8x8xf32> to vector<8x8xbf16>
    %89 = arith.truncf %70 : vector<8x16xf32> to vector<8x16xbf16>
    %cst_35 = arith.constant dense<0.000000e+00> : vector<8x16xf32>
    %90 = tpu.matmul %88, %89, %cst_35 {dimension_numbers = #tpu.dot_dimension_numbers<[1], [0], [0], [1], [0, 0, 1, 1], [], []>} : vector<8x8xbf16>, vector<8x16xbf16>, vector<8x16xf32> -> vector<8x16xf32>
    %91 = vector.extract_strided_slice %41 {offsets = [16, 0], sizes = [16, 32], strides = [1, 1]} : vector<32x32xbf16> to vector<16x32xbf16>
    %92 = arith.truncf %90 : vector<8x16xf32> to vector<8x16xbf16>
    %cst_36 = arith.constant dense<0.000000e+00> : vector<8x32xf32>
    %93 = tpu.matmul %92, %91, %cst_36 {dimension_numbers = #tpu.dot_dimension_numbers<[1], [0], [0], [1], [0, 0, 1, 1], [], []>} : vector<8x16xbf16>, vector<16x32xbf16>, vector<8x32xf32> -> vector<8x32xf32>
    %94 = arith.addf %67, %93 : vector<8x32xf32>
    %c0_37 = arith.constant 0 : index
    %c0_38 = arith.constant 0 : index
    %c0_39 = arith.constant 0 : index
    %95 = vector.load %arg8[%c0_37, %c0_38, %c0_39] : memref<2x1x32xf32, #tpu.memory_space<vmem>>, vector<1x1x32xf32>
    %96 = vector.shape_cast %95 : vector<1x1x32xf32> to vector<1x32xf32>
    %97 = vector.broadcast %96 : vector<1x32xf32> to vector<8x32xf32>
    %98 = arith.addf %94, %97 : vector<8x32xf32>
    %99 = arith.addf %98, %25 : vector<8x32xf32>
    %c0_40 = arith.constant 0 : index
    %c0_41 = arith.constant 0 : index
    %c0_42 = arith.constant 0 : index
    %100 = vector.load %arg9[%c0_40, %c0_41, %c0_42] : memref<2x1x32xf32, #tpu.memory_space<vmem>>, vector<1x1x32xf32>
    %101 = vector.shape_cast %100 : vector<1x1x32xf32> to vector<1x32xf32>
    %c0_43 = arith.constant 0 : index
    %c0_44 = arith.constant 0 : index
    %c0_45 = arith.constant 0 : index
    %102 = vector.load %arg10[%c0_43, %c0_44, %c0_45] : memref<2x1x32xf32, #tpu.memory_space<vmem>>, vector<1x1x32xf32>
    %103 = vector.shape_cast %102 : vector<1x1x32xf32> to vector<1x32xf32>
    %cst_46 = arith.constant dense<0.000000e+00> : vector<8xf32>
    %104 = vector.multi_reduction <add>, %99, %cst_46 [1] : vector<8x32xf32> to vector<8xf32>
    %105 = vector.shape_cast %104 : vector<8xf32> to vector<8x1xf32>
    %cst_47 = arith.constant 3.200000e+01 : f32
    %106 = vector.broadcast %cst_47 : f32 to vector<8x1xf32>
    %107 = arith.divf %105, %106 : vector<8x1xf32>
    %108 = vector.broadcast %107 : vector<8x1xf32> to vector<8x32xf32>
    %109 = arith.subf %99, %108 : vector<8x32xf32>
    %110 = arith.mulf %109, %109 : vector<8x32xf32>
    %cst_48 = arith.constant dense<0.000000e+00> : vector<8xf32>
    %111 = vector.multi_reduction <add>, %110, %cst_48 [1] : vector<8x32xf32> to vector<8xf32>
    %112 = vector.shape_cast %111 : vector<8xf32> to vector<8x1xf32>
    %cst_49 = arith.constant 3.200000e+01 : f32
    %113 = vector.broadcast %cst_49 : f32 to vector<8x1xf32>
    %114 = arith.divf %112, %113 : vector<8x1xf32>
    %115 = vector.broadcast %107 : vector<8x1xf32> to vector<8x32xf32>
    %116 = arith.subf %99, %115 : vector<8x32xf32>
    %cst_50 = arith.constant 9.99999996E-13 : f32
    %117 = vector.broadcast %cst_50 : f32 to vector<8x1xf32>
    %118 = arith.addf %114, %117 : vector<8x1xf32>
    %119 = math.rsqrt %118 : vector<8x1xf32>
    %120 = vector.broadcast %119 : vector<8x1xf32> to vector<8x32xf32>
    %121 = arith.mulf %116, %120 : vector<8x32xf32>
    %122 = vector.broadcast %101 : vector<1x32xf32> to vector<8x32xf32>
    %123 = arith.mulf %121, %122 : vector<8x32xf32>
    %124 = vector.broadcast %103 : vector<1x32xf32> to vector<8x32xf32>
    %125 = arith.addf %123, %124 : vector<8x32xf32>
    %c0_51 = arith.constant 0 : index
    %c0_52 = arith.constant 0 : index
    %c0_53 = arith.constant 0 : index
    %126 = vector.load %arg11[%c0_51, %c0_52, %c0_53] : memref<2x32x64xbf16, #tpu.memory_space<vmem>>, vector<1x32x64xbf16>
    %127 = vector.shape_cast %126 : vector<1x32x64xbf16> to vector<32x64xbf16>
    %128 = arith.truncf %125 : vector<8x32xf32> to vector<8x32xbf16>
    %cst_54 = arith.constant dense<0.000000e+00> : vector<8x64xf32>
    %129 = tpu.matmul %128, %127, %cst_54 {dimension_numbers = #tpu.dot_dimension_numbers<[1], [0], [0], [1], [0, 0, 1, 1], [], []>} : vector<8x32xbf16>, vector<32x64xbf16>, vector<8x64xf32> -> vector<8x64xf32>
    %c0_55 = arith.constant 0 : index
    %c0_56 = arith.constant 0 : index
    %c0_57 = arith.constant 0 : index
    %130 = vector.load %arg12[%c0_55, %c0_56, %c0_57] : memref<2x1x64xf32, #tpu.memory_space<vmem>>, vector<1x1x64xf32>
    %131 = vector.shape_cast %130 : vector<1x1x64xf32> to vector<1x64xf32>
    %132 = vector.broadcast %131 : vector<1x64xf32> to vector<8x64xf32>
    %133 = arith.addf %129, %132 : vector<8x64xf32>
    %cst_58 = arith.constant 5.000000e-01 : f32
    %134 = vector.broadcast %cst_58 : f32 to vector<8x64xf32>
    %135 = arith.mulf %134, %133 : vector<8x64xf32>
    %cst_59 = arith.constant 0.707106769 : f32
    %136 = vector.broadcast %cst_59 : f32 to vector<8x64xf32>
    %137 = arith.mulf %133, %136 : vector<8x64xf32>
    %138 = math.erf %137 : vector<8x64xf32>
    %cst_60 = arith.constant 1.000000e+00 : f32
    %139 = vector.broadcast %cst_60 : f32 to vector<8x64xf32>
    %140 = arith.addf %139, %138 : vector<8x64xf32>
    %141 = arith.mulf %135, %140 : vector<8x64xf32>
    %c0_61 = arith.constant 0 : index
    %c0_62 = arith.constant 0 : index
    %c0_63 = arith.constant 0 : index
    %142 = vector.load %arg13[%c0_61, %c0_62, %c0_63] : memref<2x64x32xbf16, #tpu.memory_space<vmem>>, vector<1x64x32xbf16>
    %143 = vector.shape_cast %142 : vector<1x64x32xbf16> to vector<64x32xbf16>
    %144 = arith.truncf %141 : vector<8x64xf32> to vector<8x64xbf16>
    %cst_64 = arith.constant dense<0.000000e+00> : vector<8x32xf32>
    %145 = tpu.matmul %144, %143, %cst_64 {dimension_numbers = #tpu.dot_dimension_numbers<[1], [0], [0], [1], [0, 0, 1, 1], [], []>} : vector<8x64xbf16>, vector<64x32xbf16>, vector<8x32xf32> -> vector<8x32xf32>
    %c0_65 = arith.constant 0 : index
    %c0_66 = arith.constant 0 : index
    %c0_67 = arith.constant 0 : index
    %146 = vector.load %arg14[%c0_65, %c0_66, %c0_67] : memref<2x1x32xf32, #tpu.memory_space<vmem>>, vector<1x1x32xf32>
    %147 = vector.shape_cast %146 : vector<1x1x32xf32> to vector<1x32xf32>
    %148 = vector.broadcast %147 : vector<1x32xf32> to vector<8x32xf32>
    %149 = arith.addf %145, %148 : vector<8x32xf32>
    %150 = arith.addf %149, %125 : vector<8x32xf32>
    %c0_68 = arith.constant 0 : index
    %c0_69 = arith.constant 0 : index
    %c0_70 = arith.constant 0 : index
    %151 = vector.load %arg15[%c0_68, %c0_69, %c0_70] : memref<2x1x32xf32, #tpu.memory_space<vmem>>, vector<1x1x32xf32>
    %152 = vector.shape_cast %151 : vector<1x1x32xf32> to vector<1x32xf32>
    %c0_71 = arith.constant 0 : index
    %c0_72 = arith.constant 0 : index
    %c0_73 = arith.constant 0 : index
    %153 = vector.load %arg16[%c0_71, %c0_72, %c0_73] : memref<2x1x32xf32, #tpu.memory_space<vmem>>, vector<1x1x32xf32>
    %154 = vector.shape_cast %153 : vector<1x1x32xf32> to vector<1x32xf32>
    %cst_74 = arith.constant dense<0.000000e+00> : vector<8xf32>
    %155 = vector.multi_reduction <add>, %150, %cst_74 [1] : vector<8x32xf32> to vector<8xf32>
    %156 = vector.shape_cast %155 : vector<8xf32> to vector<8x1xf32>
    %cst_75 = arith.constant 3.200000e+01 : f32
    %157 = vector.broadcast %cst_75 : f32 to vector<8x1xf32>
    %158 = arith.divf %156, %157 : vector<8x1xf32>
    %159 = vector.broadcast %158 : vector<8x1xf32> to vector<8x32xf32>
    %160 = arith.subf %150, %159 : vector<8x32xf32>
    %161 = arith.mulf %160, %160 : vector<8x32xf32>
    %cst_76 = arith.constant dense<0.000000e+00> : vector<8xf32>
    %162 = vector.multi_reduction <add>, %161, %cst_76 [1] : vector<8x32xf32> to vector<8xf32>
    %163 = vector.shape_cast %162 : vector<8xf32> to vector<8x1xf32>
    %cst_77 = arith.constant 3.200000e+01 : f32
    %164 = vector.broadcast %cst_77 : f32 to vector<8x1xf32>
    %165 = arith.divf %163, %164 : vector<8x1xf32>
    %166 = vector.broadcast %158 : vector<8x1xf32> to vector<8x32xf32>
    %167 = arith.subf %150, %166 : vector<8x32xf32>
    %cst_78 = arith.constant 9.99999996E-13 : f32
    %168 = vector.broadcast %cst_78 : f32 to vector<8x1xf32>
    %169 = arith.addf %165, %168 : vector<8x1xf32>
    %170 = math.rsqrt %169 : vector<8x1xf32>
    %171 = vector.broadcast %170 : vector<8x1xf32> to vector<8x32xf32>
    %172 = arith.mulf %167, %171 : vector<8x32xf32>
    %173 = vector.broadcast %152 : vector<1x32xf32> to vector<8x32xf32>
    %174 = arith.mulf %172, %173 : vector<8x32xf32>
    %175 = vector.broadcast %154 : vector<1x32xf32> to vector<8x32xf32>
    %176 = arith.addf %174, %175 : vector<8x32xf32>
    %c1 = arith.constant 1 : index
    %c0_79 = arith.constant 0 : index
    %c0_80 = arith.constant 0 : index
    %177 = vector.load %arg5[%c1, %c0_79, %c0_80] : memref<2x32x96xbf16, #tpu.memory_space<vmem>>, vector<1x32x96xbf16>
    %178 = vector.shape_cast %177 : vector<1x32x96xbf16> to vector<32x96xbf16>
    %179 = arith.truncf %176 : vector<8x32xf32> to vector<8x32xbf16>
    %cst_81 = arith.constant dense<0.000000e+00> : vector<8x96xf32>
    %180 = tpu.matmul %179, %178, %cst_81 {dimension_numbers = #tpu.dot_dimension_numbers<[1], [0], [0], [1], [0, 0, 1, 1], [], []>} : vector<8x32xbf16>, vector<32x96xbf16>, vector<8x96xf32> -> vector<8x96xf32>
    %c1_82 = arith.constant 1 : index
    %c0_83 = arith.constant 0 : index
    %c0_84 = arith.constant 0 : index
    %181 = vector.load %arg6[%c1_82, %c0_83, %c0_84] : memref<2x1x96xf32, #tpu.memory_space<vmem>>, vector<1x1x96xf32>
    %182 = vector.shape_cast %181 : vector<1x1x96xf32> to vector<1x96xf32>
    %183 = vector.broadcast %182 : vector<1x96xf32> to vector<8x96xf32>
    %184 = arith.addf %180, %183 : vector<8x96xf32>
    %c1_85 = arith.constant 1 : index
    %c0_86 = arith.constant 0 : index
    %c0_87 = arith.constant 0 : index
    %185 = vector.load %arg7[%c1_85, %c0_86, %c0_87] : memref<2x32x32xbf16, #tpu.memory_space<vmem>>, vector<1x32x32xbf16>
    %186 = vector.shape_cast %185 : vector<1x32x32xbf16> to vector<32x32xbf16>
    %187 = vector.extract_strided_slice %184 {offsets = [0, 0], sizes = [8, 16], strides = [1, 1]} : vector<8x96xf32> to vector<8x16xf32>
    %188 = vector.extract_strided_slice %184 {offsets = [0, 32], sizes = [8, 16], strides = [1, 1]} : vector<8x96xf32> to vector<8x16xf32>
    %189 = vector.extract_strided_slice %184 {offsets = [0, 64], sizes = [8, 16], strides = [1, 1]} : vector<8x96xf32> to vector<8x16xf32>
    %190 = arith.truncf %187 : vector<8x16xf32> to vector<8x16xbf16>
    %191 = arith.truncf %188 : vector<8x16xf32> to vector<8x16xbf16>
    %cst_88 = arith.constant dense<0.000000e+00> : vector<8x8xf32>
    %192 = tpu.matmul %190, %191, %cst_88 {dimension_numbers = #tpu.dot_dimension_numbers<[1], [1], [0], [0], [0, 0, 1, 0], [], []>} : vector<8x16xbf16>, vector<8x16xbf16>, vector<8x8xf32> -> vector<8x8xf32>
    %cst_89 = arith.constant 2.500000e-01 : f32
    %193 = vector.broadcast %cst_89 : f32 to vector<8x8xf32>
    %194 = arith.mulf %192, %193 : vector<8x8xf32>
    %195 = vector.broadcast %31 : vector<1x8xf32> to vector<8x8xf32>
    %196 = arith.addf %194, %195 : vector<8x8xf32>
    %cst_90 = arith.constant dense<0xFF800000> : vector<8xf32>
    %197 = vector.multi_reduction <maximumf>, %196, %cst_90 [1] : vector<8x8xf32> to vector<8xf32>
    %198 = vector.shape_cast %197 : vector<8xf32> to vector<8x1xf32>
    %199 = vector.broadcast %198 : vector<8x1xf32> to vector<8x8xf32>
    %200 = arith.subf %196, %199 : vector<8x8xf32>
    %201 = math.exp %200 : vector<8x8xf32>
    %cst_91 = arith.constant dense<0.000000e+00> : vector<8xf32>
    %202 = vector.multi_reduction <add>, %201, %cst_91 [1] : vector<8x8xf32> to vector<8xf32>
    %203 = vector.shape_cast %202 : vector<8xf32> to vector<8x1xf32>
    %204 = tpu.reciprocal %203 {approx = true} : vector<8x1xf32> -> vector<8x1xf32>
    %205 = vector.broadcast %204 : vector<8x1xf32> to vector<8x8xf32>
    %206 = arith.mulf %201, %205 : vector<8x8xf32>
    %207 = arith.truncf %206 : vector<8x8xf32> to vector<8x8xbf16>
    %208 = arith.truncf %189 : vector<8x16xf32> to vector<8x16xbf16>
    %cst_92 = arith.constant dense<0.000000e+00> : vector<8x16xf32>
    %209 = tpu.matmul %207, %208, %cst_92 {dimension_numbers = #tpu.dot_dimension_numbers<[1], [0], [0], [1], [0, 0, 1, 1], [], []>} : vector<8x8xbf16>, vector<8x16xbf16>, vector<8x16xf32> -> vector<8x16xf32>
    %210 = vector.extract_strided_slice %186 {offsets = [0, 0], sizes = [16, 32], strides = [1, 1]} : vector<32x32xbf16> to vector<16x32xbf16>
    %211 = arith.truncf %209 : vector<8x16xf32> to vector<8x16xbf16>
    %cst_93 = arith.constant dense<0.000000e+00> : vector<8x32xf32>
    %212 = tpu.matmul %211, %210, %cst_93 {dimension_numbers = #tpu.dot_dimension_numbers<[1], [0], [0], [1], [0, 0, 1, 1], [], []>} : vector<8x16xbf16>, vector<16x32xbf16>, vector<8x32xf32> -> vector<8x32xf32>
    %213 = vector.extract_strided_slice %184 {offsets = [0, 16], sizes = [8, 16], strides = [1, 1]} : vector<8x96xf32> to vector<8x16xf32>
    %214 = vector.extract_strided_slice %184 {offsets = [0, 48], sizes = [8, 16], strides = [1, 1]} : vector<8x96xf32> to vector<8x16xf32>
    %215 = vector.extract_strided_slice %184 {offsets = [0, 80], sizes = [8, 16], strides = [1, 1]} : vector<8x96xf32> to vector<8x16xf32>
    %216 = arith.truncf %213 : vector<8x16xf32> to vector<8x16xbf16>
    %217 = arith.truncf %214 : vector<8x16xf32> to vector<8x16xbf16>
    %cst_94 = arith.constant dense<0.000000e+00> : vector<8x8xf32>
    %218 = tpu.matmul %216, %217, %cst_94 {dimension_numbers = #tpu.dot_dimension_numbers<[1], [1], [0], [0], [0, 0, 1, 0], [], []>} : vector<8x16xbf16>, vector<8x16xbf16>, vector<8x8xf32> -> vector<8x8xf32>
    %cst_95 = arith.constant 2.500000e-01 : f32
    %219 = vector.broadcast %cst_95 : f32 to vector<8x8xf32>
    %220 = arith.mulf %218, %219 : vector<8x8xf32>
    %221 = vector.broadcast %31 : vector<1x8xf32> to vector<8x8xf32>
    %222 = arith.addf %220, %221 : vector<8x8xf32>
    %cst_96 = arith.constant dense<0xFF800000> : vector<8xf32>
    %223 = vector.multi_reduction <maximumf>, %222, %cst_96 [1] : vector<8x8xf32> to vector<8xf32>
    %224 = vector.shape_cast %223 : vector<8xf32> to vector<8x1xf32>
    %225 = vector.broadcast %224 : vector<8x1xf32> to vector<8x8xf32>
    %226 = arith.subf %222, %225 : vector<8x8xf32>
    %227 = math.exp %226 : vector<8x8xf32>
    %cst_97 = arith.constant dense<0.000000e+00> : vector<8xf32>
    %228 = vector.multi_reduction <add>, %227, %cst_97 [1] : vector<8x8xf32> to vector<8xf32>
    %229 = vector.shape_cast %228 : vector<8xf32> to vector<8x1xf32>
    %230 = tpu.reciprocal %229 {approx = true} : vector<8x1xf32> -> vector<8x1xf32>
    %231 = vector.broadcast %230 : vector<8x1xf32> to vector<8x8xf32>
    %232 = arith.mulf %227, %231 : vector<8x8xf32>
    %233 = arith.truncf %232 : vector<8x8xf32> to vector<8x8xbf16>
    %234 = arith.truncf %215 : vector<8x16xf32> to vector<8x16xbf16>
    %cst_98 = arith.constant dense<0.000000e+00> : vector<8x16xf32>
    %235 = tpu.matmul %233, %234, %cst_98 {dimension_numbers = #tpu.dot_dimension_numbers<[1], [0], [0], [1], [0, 0, 1, 1], [], []>} : vector<8x8xbf16>, vector<8x16xbf16>, vector<8x16xf32> -> vector<8x16xf32>
    %236 = vector.extract_strided_slice %186 {offsets = [16, 0], sizes = [16, 32], strides = [1, 1]} : vector<32x32xbf16> to vector<16x32xbf16>
    %237 = arith.truncf %235 : vector<8x16xf32> to vector<8x16xbf16>
    %cst_99 = arith.constant dense<0.000000e+00> : vector<8x32xf32>
    %238 = tpu.matmul %237, %236, %cst_99 {dimension_numbers = #tpu.dot_dimension_numbers<[1], [0], [0], [1], [0, 0, 1, 1], [], []>} : vector<8x16xbf16>, vector<16x32xbf16>, vector<8x32xf32> -> vector<8x32xf32>
    %239 = arith.addf %212, %238 : vector<8x32xf32>
    %c1_100 = arith.constant 1 : index
    %c0_101 = arith.constant 0 : index
    %c0_102 = arith.constant 0 : index
    %240 = vector.load %arg8[%c1_100, %c0_101, %c0_102] : memref<2x1x32xf32, #tpu.memory_space<vmem>>, vector<1x1x32xf32>
    %241 = vector.shape_cast %240 : vector<1x1x32xf32> to vector<1x32xf32>
    %242 = vector.broadcast %241 : vector<1x32xf32> to vector<8x32xf32>
    %243 = arith.addf %239, %242 : vector<8x32xf32>
    %244 = arith.addf %243, %176 : vector<8x32xf32>
    %c1_103 = arith.constant 1 : index
    %c0_104 = arith.constant 0 : index
    %c0_105 = arith.constant 0 : index
    %245 = vector.load %arg9[%c1_103, %c0_104, %c0_105] : memref<2x1x32xf32, #tpu.memory_space<vmem>>, vector<1x1x32xf32>
    %246 = vector.shape_cast %245 : vector<1x1x32xf32> to vector<1x32xf32>
    %c1_106 = arith.constant 1 : index
    %c0_107 = arith.constant 0 : index
    %c0_108 = arith.constant 0 : index
    %247 = vector.load %arg10[%c1_106, %c0_107, %c0_108] : memref<2x1x32xf32, #tpu.memory_space<vmem>>, vector<1x1x32xf32>
    %248 = vector.shape_cast %247 : vector<1x1x32xf32> to vector<1x32xf32>
    %cst_109 = arith.constant dense<0.000000e+00> : vector<8xf32>
    %249 = vector.multi_reduction <add>, %244, %cst_109 [1] : vector<8x32xf32> to vector<8xf32>
    %250 = vector.shape_cast %249 : vector<8xf32> to vector<8x1xf32>
    %cst_110 = arith.constant 3.200000e+01 : f32
    %251 = vector.broadcast %cst_110 : f32 to vector<8x1xf32>
    %252 = arith.divf %250, %251 : vector<8x1xf32>
    %253 = vector.broadcast %252 : vector<8x1xf32> to vector<8x32xf32>
    %254 = arith.subf %244, %253 : vector<8x32xf32>
    %255 = arith.mulf %254, %254 : vector<8x32xf32>
    %cst_111 = arith.constant dense<0.000000e+00> : vector<8xf32>
    %256 = vector.multi_reduction <add>, %255, %cst_111 [1] : vector<8x32xf32> to vector<8xf32>
    %257 = vector.shape_cast %256 : vector<8xf32> to vector<8x1xf32>
    %cst_112 = arith.constant 3.200000e+01 : f32
    %258 = vector.broadcast %cst_112 : f32 to vector<8x1xf32>
    %259 = arith.divf %257, %258 : vector<8x1xf32>
    %260 = vector.broadcast %252 : vector<8x1xf32> to vector<8x32xf32>
    %261 = arith.subf %244, %260 : vector<8x32xf32>
    %cst_113 = arith.constant 9.99999996E-13 : f32
    %262 = vector.broadcast %cst_113 : f32 to vector<8x1xf32>
    %263 = arith.addf %259, %262 : vector<8x1xf32>
    %264 = math.rsqrt %263 : vector<8x1xf32>
    %265 = vector.broadcast %264 : vector<8x1xf32> to vector<8x32xf32>
    %266 = arith.mulf %261, %265 : vector<8x32xf32>
    %267 = vector.broadcast %246 : vector<1x32xf32> to vector<8x32xf32>
    %268 = arith.mulf %266, %267 : vector<8x32xf32>
    %269 = vector.broadcast %248 : vector<1x32xf32> to vector<8x32xf32>
    %270 = arith.addf %268, %269 : vector<8x32xf32>
    %c1_114 = arith.constant 1 : index
    %c0_115 = arith.constant 0 : index
    %c0_116 = arith.constant 0 : index
    %271 = vector.load %arg11[%c1_114, %c0_115, %c0_116] : memref<2x32x64xbf16, #tpu.memory_space<vmem>>, vector<1x32x64xbf16>
    %272 = vector.shape_cast %271 : vector<1x32x64xbf16> to vector<32x64xbf16>
    %273 = arith.truncf %270 : vector<8x32xf32> to vector<8x32xbf16>
    %cst_117 = arith.constant dense<0.000000e+00> : vector<8x64xf32>
    %274 = tpu.matmul %273, %272, %cst_117 {dimension_numbers = #tpu.dot_dimension_numbers<[1], [0], [0], [1], [0, 0, 1, 1], [], []>} : vector<8x32xbf16>, vector<32x64xbf16>, vector<8x64xf32> -> vector<8x64xf32>
    %c1_118 = arith.constant 1 : index
    %c0_119 = arith.constant 0 : index
    %c0_120 = arith.constant 0 : index
    %275 = vector.load %arg12[%c1_118, %c0_119, %c0_120] : memref<2x1x64xf32, #tpu.memory_space<vmem>>, vector<1x1x64xf32>
    %276 = vector.shape_cast %275 : vector<1x1x64xf32> to vector<1x64xf32>
    %277 = vector.broadcast %276 : vector<1x64xf32> to vector<8x64xf32>
    %278 = arith.addf %274, %277 : vector<8x64xf32>
    %cst_121 = arith.constant 5.000000e-01 : f32
    %279 = vector.broadcast %cst_121 : f32 to vector<8x64xf32>
    %280 = arith.mulf %279, %278 : vector<8x64xf32>
    %cst_122 = arith.constant 0.707106769 : f32
    %281 = vector.broadcast %cst_122 : f32 to vector<8x64xf32>
    %282 = arith.mulf %278, %281 : vector<8x64xf32>
    %283 = math.erf %282 : vector<8x64xf32>
    %cst_123 = arith.constant 1.000000e+00 : f32
    %284 = vector.broadcast %cst_123 : f32 to vector<8x64xf32>
    %285 = arith.addf %284, %283 : vector<8x64xf32>
    %286 = arith.mulf %280, %285 : vector<8x64xf32>
    %c1_124 = arith.constant 1 : index
    %c0_125 = arith.constant 0 : index
    %c0_126 = arith.constant 0 : index
    %287 = vector.load %arg13[%c1_124, %c0_125, %c0_126] : memref<2x64x32xbf16, #tpu.memory_space<vmem>>, vector<1x64x32xbf16>
    %288 = vector.shape_cast %287 : vector<1x64x32xbf16> to vector<64x32xbf16>
    %289 = arith.truncf %286 : vector<8x64xf32> to vector<8x64xbf16>
    %cst_127 = arith.constant dense<0.000000e+00> : vector<8x32xf32>
    %290 = tpu.matmul %289, %288, %cst_127 {dimension_numbers = #tpu.dot_dimension_numbers<[1], [0], [0], [1], [0, 0, 1, 1], [], []>} : vector<8x64xbf16>, vector<64x32xbf16>, vector<8x32xf32> -> vector<8x32xf32>
    %c1_128 = arith.constant 1 : index
    %c0_129 = arith.constant 0 : index
    %c0_130 = arith.constant 0 : index
    %291 = vector.load %arg14[%c1_128, %c0_129, %c0_130] : memref<2x1x32xf32, #tpu.memory_space<vmem>>, vector<1x1x32xf32>
    %292 = vector.shape_cast %291 : vector<1x1x32xf32> to vector<1x32xf32>
    %293 = vector.broadcast %292 : vector<1x32xf32> to vector<8x32xf32>
    %294 = arith.addf %290, %293 : vector<8x32xf32>
    %295 = arith.addf %294, %270 : vector<8x32xf32>
    %c1_131 = arith.constant 1 : index
    %c0_132 = arith.constant 0 : index
    %c0_133 = arith.constant 0 : index
    %296 = vector.load %arg15[%c1_131, %c0_132, %c0_133] : memref<2x1x32xf32, #tpu.memory_space<vmem>>, vector<1x1x32xf32>
    %297 = vector.shape_cast %296 : vector<1x1x32xf32> to vector<1x32xf32>
    %c1_134 = arith.constant 1 : index
    %c0_135 = arith.constant 0 : index
    %c0_136 = arith.constant 0 : index
    %298 = vector.load %arg16[%c1_134, %c0_135, %c0_136] : memref<2x1x32xf32, #tpu.memory_space<vmem>>, vector<1x1x32xf32>
    %299 = vector.shape_cast %298 : vector<1x1x32xf32> to vector<1x32xf32>
    %cst_137 = arith.constant dense<0.000000e+00> : vector<8xf32>
    %300 = vector.multi_reduction <add>, %295, %cst_137 [1] : vector<8x32xf32> to vector<8xf32>
    %301 = vector.shape_cast %300 : vector<8xf32> to vector<8x1xf32>
    %cst_138 = arith.constant 3.200000e+01 : f32
    %302 = vector.broadcast %cst_138 : f32 to vector<8x1xf32>
    %303 = arith.divf %301, %302 : vector<8x1xf32>
    %304 = vector.broadcast %303 : vector<8x1xf32> to vector<8x32xf32>
    %305 = arith.subf %295, %304 : vector<8x32xf32>
    %306 = arith.mulf %305, %305 : vector<8x32xf32>
    %cst_139 = arith.constant dense<0.000000e+00> : vector<8xf32>
    %307 = vector.multi_reduction <add>, %306, %cst_139 [1] : vector<8x32xf32> to vector<8xf32>
    %308 = vector.shape_cast %307 : vector<8xf32> to vector<8x1xf32>
    %cst_140 = arith.constant 3.200000e+01 : f32
    %309 = vector.broadcast %cst_140 : f32 to vector<8x1xf32>
    %310 = arith.divf %308, %309 : vector<8x1xf32>
    %311 = vector.broadcast %303 : vector<8x1xf32> to vector<8x32xf32>
    %312 = arith.subf %295, %311 : vector<8x32xf32>
    %cst_141 = arith.constant 9.99999996E-13 : f32
    %313 = vector.broadcast %cst_141 : f32 to vector<8x1xf32>
    %314 = arith.addf %310, %313 : vector<8x1xf32>
    %315 = math.rsqrt %314 : vector<8x1xf32>
    %316 = vector.broadcast %315 : vector<8x1xf32> to vector<8x32xf32>
    %317 = arith.mulf %312, %316 : vector<8x32xf32>
    %318 = vector.broadcast %297 : vector<1x32xf32> to vector<8x32xf32>
    %319 = arith.mulf %317, %318 : vector<8x32xf32>
    %320 = vector.broadcast %299 : vector<1x32xf32> to vector<8x32xf32>
    %321 = arith.addf %319, %320 : vector<8x32xf32>
    %322 = vector.extract_strided_slice %321 {offsets = [0, 0], sizes = [1, 32], strides = [1, 1]} : vector<8x32xf32> to vector<1x32xf32>
    %c0_142 = arith.constant 0 : index
    %c0_143 = arith.constant 0 : index
    %323 = vector.load %arg17[%c0_142, %c0_143] : memref<32x32xbf16, #tpu.memory_space<vmem>>, vector<32x32xbf16>
    %324 = arith.truncf %322 : vector<1x32xf32> to vector<1x32xbf16>
    %cst_144 = arith.constant dense<0.000000e+00> : vector<1x32xf32>
    %325 = tpu.matmul %324, %323, %cst_144 {dimension_numbers = #tpu.dot_dimension_numbers<[1], [0], [0], [1], [0, 0, 1, 1], [], []>} : vector<1x32xbf16>, vector<32x32xbf16>, vector<1x32xf32> -> vector<1x32xf32>
    %c0_145 = arith.constant 0 : index
    %c0_146 = arith.constant 0 : index
    %326 = vector.load %arg18[%c0_145, %c0_146] : memref<1x32xf32, #tpu.memory_space<vmem>>, vector<1x32xf32>
    %327 = arith.addf %325, %326 : vector<1x32xf32>
    %328 = math.tanh %327 : vector<1x32xf32>
    %c0_147 = arith.constant 0 : index
    %c0_148 = arith.constant 0 : index
    %329 = vector.load %arg19[%c0_147, %c0_148] : memref<32x2xbf16, #tpu.memory_space<vmem>>, vector<32x2xbf16>
    %330 = arith.truncf %328 : vector<1x32xf32> to vector<1x32xbf16>
    %cst_149 = arith.constant dense<0.000000e+00> : vector<1x2xf32>
    %331 = tpu.matmul %330, %329, %cst_149 {dimension_numbers = #tpu.dot_dimension_numbers<[1], [0], [0], [1], [0, 0, 1, 1], [], []>} : vector<1x32xbf16>, vector<32x2xbf16>, vector<1x2xf32> -> vector<1x2xf32>
    %c0_150 = arith.constant 0 : index
    %c0_151 = arith.constant 0 : index
    %332 = vector.load %arg20[%c0_150, %c0_151] : memref<1x2xf32, #tpu.memory_space<vmem>>, vector<1x2xf32>
    %333 = arith.addf %331, %332 : vector<1x2xf32>
    %c0_152 = arith.constant 0 : index
    %c0_153 = arith.constant 0 : index
    %c0_154 = arith.constant 0 : index
    %334 = vector.load %arg21[%c0_152, %c0_153, %c0_154] : memref<1x1x2xf32, #tpu.memory_space<vmem>>, vector<1x1x2xf32>
    %335 = vector.shape_cast %334 : vector<1x1x2xf32> to vector<1x2xf32>
    %336 = vector.shape_cast %333 : vector<1x2xf32> to vector<1x1x2xf32>
    tpu.vector_store %arg21[%c0_152, %c0_153, %c0_154], %336 {strides = array<i32>} : memref<1x1x2xf32, #tpu.memory_space<vmem>>, vector<1x1x2xf32>,
    return
  }
  func.func @transform_0(%arg0: i32) -> (i32, i32, i32) {
    %c0_i32 = arith.constant 0 : i32
    %c0_i32_0 = arith.constant 0 : i32
    %c0_i32_1 = arith.constant 0 : i32
    return %arg0, %c0_i32, %c0_i32_0 : i32, i32, i32
  }
  func.func @transform_1(%arg0: i32) -> (i32, i32, i32) {
    %c0_i32 = arith.constant 0 : i32
    %c0_i32_0 = arith.constant 0 : i32
    %c0_i32_1 = arith.constant 0 : i32
    return %arg0, %c0_i32, %c0_i32_0 : i32, i32, i32
  }
  func.func @transform_2(%arg0: i32) -> (i32, i32) {
    %c0_i32 = arith.constant 0 : i32
    %c0_i32_0 = arith.constant 0 : i32
    %c0_i32_1 = arith.constant 0 : i32
    return %c0_i32, %c0_i32_0 : i32, i32
  }
  func.func @transform_3(%arg0: i32) -> (i32, i32) {
    %c0_i32 = arith.constant 0 : i32
    %c0_i32_0 = arith.constant 0 : i32
    %c0_i32_1 = arith.constant 0 : i32
    return %c0_i32, %c0_i32_0 : i32, i32
  }
  func.func @transform_4(%arg0: i32) -> (i32, i32, i32) {
    %c0_i32 = arith.constant 0 : i32
    %c0_i32_0 = arith.constant 0 : i32
    %c0_i32_1 = arith.constant 0 : i32
    %c0_i32_2 = arith.constant 0 : i32
    return %c0_i32, %c0_i32_0, %c0_i32_1 : i32, i32, i32
  }
  func.func @transform_5(%arg0: i32) -> (i32, i32, i32) {
    %c0_i32 = arith.constant 0 : i32
    %c0_i32_0 = arith.constant 0 : i32
    %c0_i32_1 = arith.constant 0 : i32
    %c0_i32_2 = arith.constant 0 : i32
    return %c0_i32, %c0_i32_0, %c0_i32_1 : i32, i32, i32
  }
  func.func @transform_6(%arg0: i32) -> (i32, i32, i32) {
    %c0_i32 = arith.constant 0 : i32
    %c0_i32_0 = arith.constant 0 : i32
    %c0_i32_1 = arith.constant 0 : i32
    %c0_i32_2 = arith.constant 0 : i32
    return %c0_i32, %c0_i32_0, %c0_i32_1 : i32, i32, i32
  }
  func.func @transform_7(%arg0: i32) -> (i32, i32, i32) {
    %c0_i32 = arith.constant 0 : i32
    %c0_i32_0 = arith.constant 0 : i32
    %c0_i32_1 = arith.constant 0 : i32
    %c0_i32_2 = arith.constant 0 : i32
    return %c0_i32, %c0_i32_0, %c0_i32_1 : i32, i32, i32
  }
  func.func @transform_8(%arg0: i32) -> (i32, i32, i32) {
    %c0_i32 = arith.constant 0 : i32
    %c0_i32_0 = arith.constant 0 : i32
    %c0_i32_1 = arith.constant 0 : i32
    %c0_i32_2 = arith.constant 0 : i32
    return %c0_i32, %c0_i32_0, %c0_i32_1 : i32, i32, i32
  }
  func.func @transform_9(%arg0: i32) -> (i32, i32, i32) {
    %c0_i32 = arith.constant 0 : i32
    %c0_i32_0 = arith.constant 0 : i32
    %c0_i32_1 = arith.constant 0 : i32
    %c0_i32_2 = arith.constant 0 : i32
    return %c0_i32, %c0_i32_0, %c0_i32_1 : i32, i32, i32
  }
  func.func @transform_10(%arg0: i32) -> (i32, i32, i32) {
    %c0_i32 = arith.constant 0 : i32
    %c0_i32_0 = arith.constant 0 : i32
    %c0_i32_1 = arith.constant 0 : i32
    %c0_i32_2 = arith.constant 0 : i32
    return %c0_i32, %c0_i32_0, %c0_i32_1 : i32, i32, i32
  }
  func.func @transform_11(%arg0: i32) -> (i32, i32, i32) {
    %c0_i32 = arith.constant 0 : i32
    %c0_i32_0 = arith.constant 0 : i32
    %c0_i32_1 = arith.constant 0 : i32
    %c0_i32_2 = arith.constant 0 : i32
    return %c0_i32, %c0_i32_0, %c0_i32_1 : i32, i32, i32
  }
  func.func @transform_12(%arg0: i32) -> (i32, i32, i32) {
    %c0_i32 = arith.constant 0 : i32
    %c0_i32_0 = arith.constant 0 : i32
    %c0_i32_1 = arith.constant 0 : i32
    %c0_i32_2 = arith.constant 0 : i32
    return %c0_i32, %c0_i32_0, %c0_i32_1 : i32, i32, i32
  }
  func.func @transform_13(%arg0: i32) -> (i32, i32, i32) {
    %c0_i32 = arith.constant 0 : i32
    %c0_i32_0 = arith.constant 0 : i32
    %c0_i32_1 = arith.constant 0 : i32
    %c0_i32_2 = arith.constant 0 : i32
    return %c0_i32, %c0_i32_0, %c0_i32_1 : i32, i32, i32
  }
  func.func @transform_14(%arg0: i32) -> (i32, i32, i32) {
    %c0_i32 = arith.constant 0 : i32
    %c0_i32_0 = arith.constant 0 : i32
    %c0_i32_1 = arith.constant 0 : i32
    %c0_i32_2 = arith.constant 0 : i32
    return %c0_i32, %c0_i32_0, %c0_i32_1 : i32, i32, i32
  }
  func.func @transform_15(%arg0: i32) -> (i32, i32, i32) {
    %c0_i32 = arith.constant 0 : i32
    %c0_i32_0 = arith.constant 0 : i32
    %c0_i32_1 = arith.constant 0 : i32
    %c0_i32_2 = arith.constant 0 : i32
    return %c0_i32, %c0_i32_0, %c0_i32_1 : i32, i32, i32
  }
  func.func @transform_16(%arg0: i32) -> (i32, i32) {
    %c0_i32 = arith.constant 0 : i32
    %c0_i32_0 = arith.constant 0 : i32
    %c0_i32_1 = arith.constant 0 : i32
    return %c0_i32, %c0_i32_0 : i32, i32
  }
  func.func @transform_17(%arg0: i32) -> (i32, i32) {
    %c0_i32 = arith.constant 0 : i32
    %c0_i32_0 = arith.constant 0 : i32
    %c0_i32_1 = arith.constant 0 : i32
    return %c0_i32, %c0_i32_0 : i32, i32
  }
  func.func @transform_18(%arg0: i32) -> (i32, i32) {
    %c0_i32 = arith.constant 0 : i32
    %c0_i32_0 = arith.constant 0 : i32
    %c0_i32_1 = arith.constant 0 : i32
    return %c0_i32, %c0_i32_0 : i32, i32
  }
  func.func @transform_19(%arg0: i32) -> (i32, i32) {
    %c0_i32 = arith.constant 0 : i32
    %c0_i32_0 = arith.constant 0 : i32
    %c0_i32_1 = arith.constant 0 : i32
    return %c0_i32, %c0_i32_0 : i32, i32
  }
  func.func @transform_20(%arg0: i32) -> (i32, i32, i32) {
    %c0_i32 = arith.constant 0 : i32
    %c0_i32_0 = arith.constant 0 : i32
    %c0_i32_1 = arith.constant 0 : i32
    return %arg0, %c0_i32, %c0_i32_0 : i32, i32, i32
  }
}

</mosaic_0001>

<llo_original>
// kernel: tpu_custom_call.1
$region0: #{tpu_custom_call.1}
  #allocation0 [shape = 'u32[]', space=smem, size = 0x4, offset = 0x4, fixed_abs, tag = 'smem constant byte address 0x4 - core index']
  #allocation1 [shape = 'u32[72,128]{1,0:T(1,128)}', space=vmem, size = 0x9000, scoped, tag = 'internal scratch']
  %s0 = inlined_call_operand.vmem [shape: f32[2,8,32], index: 0, kind: input, shape index: {}]
  %s1 = inlined_call_operand.hbm [shape: f32[2,1,8], index: 1, kind: input, shape index: {}]
  %s2 = inlined_call_operand.vmem [shape: f32[1,32], index: 2, kind: input, shape index: {}]
  %s3 = inlined_call_operand.hbm [shape: f32[1,32], index: 3, kind: input, shape index: {}]
  %s4 = inlined_call_operand.vmem [shape: bf16[2,32,96], index: 4, kind: input, shape index: {}]
  %s5 = inlined_call_operand.vmem [shape: f32[2,1,96], index: 5, kind: input, shape index: {}]
  %s6 = inlined_call_operand.vmem [shape: bf16[2,32,32], index: 6, kind: input, shape index: {}]
  %s7 = inlined_call_operand.vmem [shape: f32[2,1,32], index: 7, kind: input, shape index: {}]
  %s8 = inlined_call_operand.vmem [shape: f32[2,1,32], index: 8, kind: input, shape index: {}]
  %s9 = inlined_call_operand.hbm [shape: f32[2,1,32], index: 9, kind: input, shape index: {}]
  %s10 = inlined_call_operand.vmem [shape: bf16[2,32,64], index: 10, kind: input, shape index: {}]
  %s11 = inlined_call_operand.vmem [shape: f32[2,1,64], index: 11, kind: input, shape index: {}]
  %s12 = inlined_call_operand.vmem [shape: bf16[2,64,32], index: 12, kind: input, shape index: {}]
  %s13 = inlined_call_operand.vmem [shape: f32[2,1,32], index: 13, kind: input, shape index: {}]
  %s14 = inlined_call_operand.vmem [shape: f32[2,1,32], index: 14, kind: input, shape index: {}]
  %s15 = inlined_call_operand.hbm [shape: f32[2,1,32], index: 15, kind: input, shape index: {}]
  %s16 = inlined_call_operand.hbm [shape: bf16[32,32], index: 16, kind: input, shape index: {}]
  %s17 = inlined_call_operand.vmem [shape: f32[1,32], index: 17, kind: input, shape index: {}]
  %s18 = inlined_call_operand.vmem [shape: bf16[32,2], index: 18, kind: input, shape index: {}]
  %s19 = inlined_call_operand.vmem [shape: f32[1,2], index: 19, kind: input, shape index: {}]
  %s20 = inlined_call_operand.hbm [shape: f32[2,1,2], index: 20, kind: output, shape index: {}]
  %s21 = sld [smem:[#allocation0]]
  $region133: #{tpu_custom_call.1} parent=0
    _
  %s23 = ssub.s32 1, %s21
  %s24 = scalar_select 0, %s23, %s21
  $region1: #{tpu_custom_call.1} parent=0
    #allocation2 [shape = 'u8[1024]{0}', space=vmem, size = 0x400, scoped, tag = 'input window, operand 1']
    #allocation3 [shape = 's32[2]{0}', space=sflag, size = 0x8, scoped, tag = 'scoped memory for tpu_custom_call.1']
    #allocation4 [shape = 's32[2]{0}', space=sflag, size = 0x8, scoped, tag = 'scoped memory for tpu_custom_call.1']
    #allocation5 [shape = 'u8[512]{0}', space=vmem, size = 0x400, scoped, tag = 'input window, operand 3, single buffered']
    #allocation6 [shape = 's32[1]{0}', space=sflag, size = 0x4, scoped, tag = 'scoped memory for tpu_custom_call.1']
    #allocation7 [shape = 'u8[1024]{0}', space=vmem, size = 0x400, scoped, tag = 'input window, operand 9, single buffered']
    #allocation8 [shape = 'u8[1024]{0}', space=vmem, size = 0x400, scoped, tag = 'input window, operand 15, single buffered']
    #allocation9 [shape = 's32[1]{0}', space=sflag, size = 0x4, scoped, tag = 'scoped memory for tpu_custom_call.1']
    #allocation10 [shape = 'u8[8192]{0}', space=vmem, size = 0x2000, scoped, tag = 'input window, operand 16, single buffered']
    #allocation11 [shape = 'u8[1024]{0}', space=vmem, size = 0x400, scoped, tag = 'output window, operand 0']
    %25 = vsyncpa [#allocation3], 0
    %s26 = scalar_lea.sflag [#allocation3], 1
    %27 = vsyncpa %s26, 0
    %28 = vsyncpa [#allocation6], 0
    %29 = vsyncpa [#allocation9], 0
    %30 = vsyncpa [#allocation4], 0
    %s31 = scalar_lea.sflag [#allocation4], 1
    %32 = vsyncpa %s31, 0
    loop: start=0, step=1, limit=4
    $region2: #{tpu_custom_call.1} parent=1 // loop_pre_header
      _
    $region3: #{tpu_custom_call.1} parent=1 // loop_header
      %s34 = sphi 0, %s38
      %p35 = scmp.ge.s32.totalorder %s34, 4
      %s44 = sphi 0, %s46
      %s47 = sphi 0, %s44
      %s48 = sphi 0, %s47
      %s64 = sphi 0, %s48
      %s70 = sphi 0, %s72
      %s73 = sphi 0, %s70
      %s74 = sphi 0, %s73
      %s90 = sphi 0, %s74
      %s94 = sphi 0, %s94
      %s96 = sphi 0, %s94
      %s97 = sphi 0, %s96
      %s111 = sphi 0, %s97
      %s115 = sphi 0, %s115
      %s117 = sphi 0, %s115
      %s118 = sphi 0, %s117
      %s132 = sphi 0, %s118
      %s136 = sphi 0, %s136
      %s138 = sphi 0, %s136
      %s139 = sphi 0, %s138
      %s153 = sphi 0, %s139
      %s157 = sphi 0, %s157
      %s159 = sphi 0, %s157
      %s160 = sphi 0, %s159
      %s174 = sphi 0, %s160
      %s178 = sphi 0, %s178
      %s180 = sphi 0, %s178
      %s181 = sphi 0, %s180
      %s195 = sphi 0, %s181
      %s199 = sphi 0, %s199
      %s201 = sphi 0, %s199
      %s202 = sphi 0, %s201
      %s216 = sphi 0, %s202
      %s220 = sphi 0, %s220
      %s222 = sphi 0, %s220
      %s223 = sphi 0, %s222
      %s237 = sphi 0, %s223
      %s241 = sphi 0, %s241
      %s243 = sphi 0, %s241
      %s244 = sphi 0, %s243
      %s258 = sphi 0, %s244
      %s262 = sphi 0, %s262
      %s264 = sphi 0, %s262
      %s265 = sphi 0, %s264
      %s279 = sphi 0, %s265
      %s283 = sphi 0, %s283
      %s285 = sphi 0, %s283
      %s286 = sphi 0, %s285
      %s300 = sphi 0, %s286
      %s304 = sphi 0, %s304
      %s306 = sphi 0, %s304
      %s307 = sphi 0, %s306
      %s321 = sphi 0, %s307
      %s325 = sphi 0, %s325
      %s327 = sphi 0, %s325
      %s328 = sphi 0, %s327
      %s342 = sphi 0, %s328
      %s346 = sphi 0, %s346
      %s348 = sphi 0, %s346
      %s349 = sphi 0, %s348
      %s363 = sphi 0, %s349
      %s367 = sphi 0, %s367
      %s369 = sphi 0, %s367
      %s370 = sphi 0, %s369
      %s384 = sphi 0, %s370
      %s388 = sphi 0, %s388
      %s390 = sphi 0, %s388
      %s391 = sphi 0, %s390
      %s405 = sphi 0, %s391
      %s409 = sphi 0, %s409
      %s411 = sphi 0, %s409
      %s412 = sphi 0, %s411
      %s426 = sphi 0, %s412
      %s430 = sphi 0, %s430
      %s432 = sphi 0, %s430
      %s433 = sphi 0, %s432
      %s447 = sphi 0, %s433
      %s451 = sphi 0, %s451
      %s453 = sphi 0, %s451
      %s454 = sphi 0, %s453
      %s468 = sphi 0, %s454
      %s474 = sphi 0, %s476
      %s477 = sphi 0, %s474
      %s478 = sphi 0, %s477
      %s494 = sphi 0, %s478
    $region4: #{tpu_custom_call.1} parent=1 // loop_header_branch
      %37 = sbr.rel (%p35) target = $region8
    $region5: #{tpu_custom_call.1} parent=1 // loop_body
      %s39 = ssub.s32 %s34, 1
      %s40 = ssub.s32 %s34, 2
      %s41 = sadd.s32 %s34, 1
      %s42 = ssub.s32 %s34, %s41
      %p43 = scmp.eq.s32.totalorder %s42, 0
      %s45 = sadd.s32 %s44, 1
      %s46 = scalar_select %p43, %s44, %s45
      %p49 = pneg %p43
      %p50 = scmp.eq.s32.totalorder %s34, 1
      %p51 = por %p49, %p50
      %p52 = scmp.ne.s32.totalorder %s44, %s47
      %p53 = scmp.eq.s32.totalorder %s34, 0
      %p54 = por %p52, %p53
      %p55 = scmp.ne.s32.totalorder %s44, %s47
      %p56 = scmp.eq.s32.totalorder %s39, 1
      %p57 = por %p55, %p56
      %p58 = scmp.ne.s32.totalorder %s47, %s48
      %p59 = scmp.eq.s32.totalorder %s39, 0
      %p60 = por %p58, %p59
      %p61 = scmp.ne.s32.totalorder %s47, %s48
      %p62 = scmp.eq.s32.totalorder %s40, 1
      %p63 = por %p61, %p62
      %p65 = scmp.ne.s32.totalorder %s48, %s64
      %p66 = scmp.eq.s32.totalorder %s40, 0
      %p67 = por %p65, %p66
      %s68 = ssub.s32 %s34, %s41
      %p69 = scmp.eq.s32.totalorder %s68, 0
      %s71 = sadd.s32 %s70, 1
      %s72 = scalar_select %p69, %s70, %s71
      %p75 = pneg %p69
      %p76 = scmp.eq.s32.totalorder %s34, 1
      %p77 = por %p75, %p76
      %p78 = scmp.ne.s32.totalorder %s70, %s73
      %p79 = scmp.eq.s32.totalorder %s34, 0
      %p80 = por %p78, %p79
      %p81 = scmp.ne.s32.totalorder %s70, %s73
      %p82 = scmp.eq.s32.totalorder %s39, 1
      %p83 = por %p81, %p82
      %p84 = scmp.ne.s32.totalorder %s73, %s74
      %p85 = scmp.eq.s32.totalorder %s39, 0
      %p86 = por %p84, %p85
      %p87 = scmp.ne.s32.totalorder %s73, %s74
      %p88 = scmp.eq.s32.totalorder %s40, 1
      %p89 = por %p87, %p88
      %p91 = scmp.ne.s32.totalorder %s74, %s90
      %p92 = scmp.eq.s32.totalorder %s40, 0
      %p93 = por %p91, %p92
      %s95 = sadd.s32 %s94, 1
      %p98 = scmp.eq.s32.totalorder %s34, 1
      %p99 = scmp.ne.s32.totalorder %s94, %s96
      %p100 = scmp.eq.s32.totalorder %s34, 0
      %p101 = por %p99, %p100
      %p102 = scmp.ne.s32.totalorder %s94, %s96
      %p103 = scmp.eq.s32.totalorder %s39, 1
      %p104 = por %p102, %p103
      %p105 = scmp.ne.s32.totalorder %s96, %s97
      %p106 = scmp.eq.s32.totalorder %s39, 0
      %p107 = por %p105, %p106
      %p108 = scmp.ne.s32.totalorder %s96, %s97
      %p109 = scmp.eq.s32.totalorder %s40, 1
      %p110 = por %p108, %p109
      %p112 = scmp.ne.s32.totalorder %s97, %s111
      %p113 = scmp.eq.s32.totalorder %s40, 0
      %p114 = por %p112, %p113
      %s116 = sadd.s32 %s115, 1
      %p119 = scmp.eq.s32.totalorder %s34, 1
      %p120 = scmp.ne.s32.totalorder %s115, %s117
      %p121 = scmp.eq.s32.totalorder %s34, 0
      %p122 = por %p120, %p121
      %p123 = scmp.ne.s32.totalorder %s115, %s117
      %p124 = scmp.eq.s32.totalorder %s39, 1
      %p125 = por %p123, %p124
      %p126 = scmp.ne.s32.totalorder %s117, %s118
      %p127 = scmp.eq.s32.totalorder %s39, 0
      %p128 = por %p126, %p127
      %p129 = scmp.ne.s32.totalorder %s117, %s118
      %p130 = scmp.eq.s32.totalorder %s40, 1
      %p131 = por %p129, %p130
      %p133 = scmp.ne.s32.totalorder %s118, %s132
      %p134 = scmp.eq.s32.totalorder %s40, 0
      %p135 = por %p133, %p134
      %s137 = sadd.s32 %s136, 1
      %p140 = scmp.eq.s32.totalorder %s34, 1
      %p141 = scmp.ne.s32.totalorder %s136, %s138
      %p142 = scmp.eq.s32.totalorder %s34, 0
      %p143 = por %p141, %p142
      %p144 = scmp.ne.s32.totalorder %s136, %s138
      %p145 = scmp.eq.s32.totalorder %s39, 1
      %p146 = por %p144, %p145
      %p147 = scmp.ne.s32.totalorder %s138, %s139
      %p148 = scmp.eq.s32.totalorder %s39, 0
      %p149 = por %p147, %p148
      %p150 = scmp.ne.s32.totalorder %s138, %s139
      %p151 = scmp.eq.s32.totalorder %s40, 1
      %p152 = por %p150, %p151
      %p154 = scmp.ne.s32.totalorder %s139, %s153
      %p155 = scmp.eq.s32.totalorder %s40, 0
      %p156 = por %p154, %p155
      %s158 = sadd.s32 %s157, 1
      %p161 = scmp.eq.s32.totalorder %s34, 1
      %p162 = scmp.ne.s32.totalorder %s157, %s159
      %p163 = scmp.eq.s32.totalorder %s34, 0
      %p164 = por %p162, %p163
      %p165 = scmp.ne.s32.totalorder %s157, %s159
      %p166 = scmp.eq.s32.totalorder %s39, 1
      %p167 = por %p165, %p166
      %p168 = scmp.ne.s32.totalorder %s159, %s160
      %p169 = scmp.eq.s32.totalorder %s39, 0
      %p170 = por %p168, %p169
      %p171 = scmp.ne.s32.totalorder %s159, %s160
      %p172 = scmp.eq.s32.totalorder %s40, 1
      %p173 = por %p171, %p172
      %p175 = scmp.ne.s32.totalorder %s160, %s174
      %p176 = scmp.eq.s32.totalorder %s40, 0
      %p177 = por %p175, %p176
      %s179 = sadd.s32 %s178, 1
      %p182 = scmp.eq.s32.totalorder %s34, 1
      %p183 = scmp.ne.s32.totalorder %s178, %s180
      %p184 = scmp.eq.s32.totalorder %s34, 0
      %p185 = por %p183, %p184
      %p186 = scmp.ne.s32.totalorder %s178, %s180
      %p187 = scmp.eq.s32.totalorder %s39, 1
      %p188 = por %p186, %p187
      %p189 = scmp.ne.s32.totalorder %s180, %s181
      %p190 = scmp.eq.s32.totalorder %s39, 0
      %p191 = por %p189, %p190
      %p192 = scmp.ne.s32.totalorder %s180, %s181
      %p193 = scmp.eq.s32.totalorder %s40, 1
      %p194 = por %p192, %p193
      %p196 = scmp.ne.s32.totalorder %s181, %s195
      %p197 = scmp.eq.s32.totalorder %s40, 0
      %p198 = por %p196, %p197
      %s200 = sadd.s32 %s199, 1
      %p203 = scmp.eq.s32.totalorder %s34, 1
      %p204 = scmp.ne.s32.totalorder %s199, %s201
      %p205 = scmp.eq.s32.totalorder %s34, 0
      %p206 = por %p204, %p205
      %p207 = scmp.ne.s32.totalorder %s199, %s201
      %p208 = scmp.eq.s32.totalorder %s39, 1
      %p209 = por %p207, %p208
      %p210 = scmp.ne.s32.totalorder %s201, %s202
      %p211 = scmp.eq.s32.totalorder %s39, 0
      %p212 = por %p210, %p211
      %p213 = scmp.ne.s32.totalorder %s201, %s202
      %p214 = scmp.eq.s32.totalorder %s40, 1
      %p215 = por %p213, %p214
      %p217 = scmp.ne.s32.totalorder %s202, %s216
      %p218 = scmp.eq.s32.totalorder %s40, 0
      %p219 = por %p217, %p218
      %s221 = sadd.s32 %s220, 1
      %p224 = scmp.eq.s32.totalorder %s34, 1
      %p225 = scmp.ne.s32.totalorder %s220, %s222
      %p226 = scmp.eq.s32.totalorder %s34, 0
      %p227 = por %p225, %p226
      %p228 = scmp.ne.s32.totalorder %s220, %s222
      %p229 = scmp.eq.s32.totalorder %s39, 1
      %p230 = por %p228, %p229
      %p231 = scmp.ne.s32.totalorder %s222, %s223
      %p232 = scmp.eq.s32.totalorder %s39, 0
      %p233 = por %p231, %p232
      %p234 = scmp.ne.s32.totalorder %s222, %s223
      %p235 = scmp.eq.s32.totalorder %s40, 1
      %p236 = por %p234, %p235
      %p238 = scmp.ne.s32.totalorder %s223, %s237
      %p239 = scmp.eq.s32.totalorder %s40, 0
      %p240 = por %p238, %p239
      %s242 = sadd.s32 %s241, 1
      %p245 = scmp.eq.s32.totalorder %s34, 1
      %p246 = scmp.ne.s32.totalorder %s241, %s243
      %p247 = scmp.eq.s32.totalorder %s34, 0
      %p248 = por %p246, %p247
      %p249 = scmp.ne.s32.totalorder %s241, %s243
      %p250 = scmp.eq.s32.totalorder %s39, 1
      %p251 = por %p249, %p250
      %p252 = scmp.ne.s32.totalorder %s243, %s244
      %p253 = scmp.eq.s32.totalorder %s39, 0
      %p254 = por %p252, %p253
      %p255 = scmp.ne.s32.totalorder %s243, %s244
      %p256 = scmp.eq.s32.totalorder %s40, 1
      %p257 = por %p255, %p256
      %p259 = scmp.ne.s32.totalorder %s244, %s258
      %p260 = scmp.eq.s32.totalorder %s40, 0
      %p261 = por %p259, %p260
      %s263 = sadd.s32 %s262, 1
      %p266 = scmp.eq.s32.totalorder %s34, 1
      %p267 = scmp.ne.s32.totalorder %s262, %s264
      %p268 = scmp.eq.s32.totalorder %s34, 0
      %p269 = por %p267, %p268
      %p270 = scmp.ne.s32.totalorder %s262, %s264
      %p271 = scmp.eq.s32.totalorder %s39, 1
      %p272 = por %p270, %p271
      %p273 = scmp.ne.s32.totalorder %s264, %s265
      %p274 = scmp.eq.s32.totalorder %s39, 0
      %p275 = por %p273, %p274
      %p276 = scmp.ne.s32.totalorder %s264, %s265
      %p277 = scmp.eq.s32.totalorder %s40, 1
      %p278 = por %p276, %p277
      %p280 = scmp.ne.s32.totalorder %s265, %s279
      %p281 = scmp.eq.s32.totalorder %s40, 0
      %p282 = por %p280, %p281
      %s284 = sadd.s32 %s283, 1
      %p287 = scmp.eq.s32.totalorder %s34, 1
      %p288 = scmp.ne.s32.totalorder %s283, %s285
      %p289 = scmp.eq.s32.totalorder %s34, 0
      %p290 = por %p288, %p289
      %p291 = scmp.ne.s32.totalorder %s283, %s285
      %p292 = scmp.eq.s32.totalorder %s39, 1
      %p293 = por %p291, %p292
      %p294 = scmp.ne.s32.totalorder %s285, %s286
      %p295 = scmp.eq.s32.totalorder %s39, 0
      %p296 = por %p294, %p295
      %p297 = scmp.ne.s32.totalorder %s285, %s286
      %p298 = scmp.eq.s32.totalorder %s40, 1
      %p299 = por %p297, %p298
      %p301 = scmp.ne.s32.totalorder %s286, %s300
      %p302 = scmp.eq.s32.totalorder %s40, 0
      %p303 = por %p301, %p302
      %s305 = sadd.s32 %s304, 1
      %p308 = scmp.eq.s32.totalorder %s34, 1
      %p309 = scmp.ne.s32.totalorder %s304, %s306
      %p310 = scmp.eq.s32.totalorder %s34, 0
      %p311 = por %p309, %p310
      %p312 = scmp.ne.s32.totalorder %s304, %s306
      %p313 = scmp.eq.s32.totalorder %s39, 1
      %p314 = por %p312, %p313
      %p315 = scmp.ne.s32.totalorder %s306, %s307
      %p316 = scmp.eq.s32.totalorder %s39, 0
      %p317 = por %p315, %p316
      %p318 = scmp.ne.s32.totalorder %s306, %s307
      %p319 = scmp.eq.s32.totalorder %s40, 1
      %p320 = por %p318, %p319
      %p322 = scmp.ne.s32.totalorder %s307, %s321
      %p323 = scmp.eq.s32.totalorder %s40, 0
      %p324 = por %p322, %p323
      %s326 = sadd.s32 %s325, 1
      %p329 = scmp.eq.s32.totalorder %s34, 1
      %p330 = scmp.ne.s32.totalorder %s325, %s327
      %p331 = scmp.eq.s32.totalorder %s34, 0
      %p332 = por %p330, %p331
      %p333 = scmp.ne.s32.totalorder %s325, %s327
      %p334 = scmp.eq.s32.totalorder %s39, 1
      %p335 = por %p333, %p334
      %p336 = scmp.ne.s32.totalorder %s327, %s328
      %p337 = scmp.eq.s32.totalorder %s39, 0
      %p338 = por %p336, %p337
      %p339 = scmp.ne.s32.totalorder %s327, %s328
      %p340 = scmp.eq.s32.totalorder %s40, 1
      %p341 = por %p339, %p340
      %p343 = scmp.ne.s32.totalorder %s328, %s342
      %p344 = scmp.eq.s32.totalorder %s40, 0
      %p345 = por %p343, %p344
      %s347 = sadd.s32 %s346, 1
      %p350 = scmp.eq.s32.totalorder %s34, 1
      %p351 = scmp.ne.s32.totalorder %s346, %s348
      %p352 = scmp.eq.s32.totalorder %s34, 0
      %p353 = por %p351, %p352
      %p354 = scmp.ne.s32.totalorder %s346, %s348
      %p355 = scmp.eq.s32.totalorder %s39, 1
      %p356 = por %p354, %p355
      %p357 = scmp.ne.s32.totalorder %s348, %s349
      %p358 = scmp.eq.s32.totalorder %s39, 0
      %p359 = por %p357, %p358
      %p360 = scmp.ne.s32.totalorder %s348, %s349
      %p361 = scmp.eq.s32.totalorder %s40, 1
      %p362 = por %p360, %p361
      %p364 = scmp.ne.s32.totalorder %s349, %s363
      %p365 = scmp.eq.s32.totalorder %s40, 0
      %p366 = por %p364, %p365
      %s368 = sadd.s32 %s367, 1
      %p371 = scmp.eq.s32.totalorder %s34, 1
      %p372 = scmp.ne.s32.totalorder %s367, %s369
      %p373 = scmp.eq.s32.totalorder %s34, 0
      %p374 = por %p372, %p373
      %p375 = scmp.ne.s32.totalorder %s367, %s369
      %p376 = scmp.eq.s32.totalorder %s39, 1
      %p377 = por %p375, %p376
      %p378 = scmp.ne.s32.totalorder %s369, %s370
      %p379 = scmp.eq.s32.totalorder %s39, 0
      %p380 = por %p378, %p379
      %p381 = scmp.ne.s32.totalorder %s369, %s370
      %p382 = scmp.eq.s32.totalorder %s40, 1
      %p383 = por %p381, %p382
      %p385 = scmp.ne.s32.totalorder %s370, %s384
      %p386 = scmp.eq.s32.totalorder %s40, 0
      %p387 = por %p385, %p386
      %s389 = sadd.s32 %s388, 1
      %p392 = scmp.eq.s32.totalorder %s34, 1
      %p393 = scmp.ne.s32.totalorder %s388, %s390
      %p394 = scmp.eq.s32.totalorder %s34, 0
      %p395 = por %p393, %p394
      %p396 = scmp.ne.s32.totalorder %s388, %s390
      %p397 = scmp.eq.s32.totalorder %s39, 1
      %p398 = por %p396, %p397
      %p399 = scmp.ne.s32.totalorder %s390, %s391
      %p400 = scmp.eq.s32.totalorder %s39, 0
      %p401 = por %p399, %p400
      %p402 = scmp.ne.s32.totalorder %s390, %s391
      %p403 = scmp.eq.s32.totalorder %s40, 1
      %p404 = por %p402, %p403
      %p406 = scmp.ne.s32.totalorder %s391, %s405
      %p407 = scmp.eq.s32.totalorder %s40, 0
      %p408 = por %p406, %p407
      %s410 = sadd.s32 %s409, 1
      %p413 = scmp.eq.s32.totalorder %s34, 1
      %p414 = scmp.ne.s32.totalorder %s409, %s411
      %p415 = scmp.eq.s32.totalorder %s34, 0
      %p416 = por %p414, %p415
      %p417 = scmp.ne.s32.totalorder %s409, %s411
      %p418 = scmp.eq.s32.totalorder %s39, 1
      %p419 = por %p417, %p418
      %p420 = scmp.ne.s32.totalorder %s411, %s412
      %p421 = scmp.eq.s32.totalorder %s39, 0
      %p422 = por %p420, %p421
      %p423 = scmp.ne.s32.totalorder %s411, %s412
      %p424 = scmp.eq.s32.totalorder %s40, 1
      %p425 = por %p423, %p424
      %p427 = scmp.ne.s32.totalorder %s412, %s426
      %p428 = scmp.eq.s32.totalorder %s40, 0
      %p429 = por %p427, %p428
      %s431 = sadd.s32 %s430, 1
      %p434 = scmp.eq.s32.totalorder %s34, 1
      %p435 = scmp.ne.s32.totalorder %s430, %s432
      %p436 = scmp.eq.s32.totalorder %s34, 0
      %p437 = por %p435, %p436
      %p438 = scmp.ne.s32.totalorder %s430, %s432
      %p439 = scmp.eq.s32.totalorder %s39, 1
      %p440 = por %p438, %p439
      %p441 = scmp.ne.s32.totalorder %s432, %s433
      %p442 = scmp.eq.s32.totalorder %s39, 0
      %p443 = por %p441, %p442
      %p444 = scmp.ne.s32.totalorder %s432, %s433
      %p445 = scmp.eq.s32.totalorder %s40, 1
      %p446 = por %p444, %p445
      %p448 = scmp.ne.s32.totalorder %s433, %s447
      %p449 = scmp.eq.s32.totalorder %s40, 0
      %p450 = por %p448, %p449
      %s452 = sadd.s32 %s451, 1
      %p455 = scmp.eq.s32.totalorder %s34, 1
      %p456 = scmp.ne.s32.totalorder %s451, %s453
      %p457 = scmp.eq.s32.totalorder %s34, 0
      %p458 = por %p456, %p457
      %p459 = scmp.ne.s32.totalorder %s451, %s453
      %p460 = scmp.eq.s32.totalorder %s39, 1
      %p461 = por %p459, %p460
      %p462 = scmp.ne.s32.totalorder %s453, %s454
      %p463 = scmp.eq.s32.totalorder %s39, 0
      %p464 = por %p462, %p463
      %p465 = scmp.ne.s32.totalorder %s453, %s454
      %p466 = scmp.eq.s32.totalorder %s40, 1
      %p467 = por %p465, %p466
      %p469 = scmp.ne.s32.totalorder %s454, %s468
      %p470 = scmp.eq.s32.totalorder %s40, 0
      %p471 = por %p469, %p470
      %s472 = ssub.s32 %s34, %s41
      %p473 = scmp.eq.s32.totalorder %s472, 0
      %s475 = sadd.s32 %s474, 1
      %s476 = scalar_select %p473, %s474, %s475
      %p479 = pneg %p473
      %p480 = scmp.eq.s32.totalorder %s34, 1
      %p481 = por %p479, %p480
      %p482 = scmp.ne.s32.totalorder %s474, %s477
      %p483 = scmp.eq.s32.totalorder %s34, 0
      %p484 = por %p482, %p483
      %p485 = scmp.ne.s32.totalorder %s474, %s477
      %p486 = scmp.eq.s32.totalorder %s39, 1
      %p487 = por %p485, %p486
      %p488 = scmp.ne.s32.totalorder %s477, %s478
      %p489 = scmp.eq.s32.totalorder %s39, 0
      %p490 = por %p488, %p489
      %p491 = scmp.ne.s32.totalorder %s477, %s478
      %p492 = scmp.eq.s32.totalorder %s40, 1
      %p493 = por %p491, %p492
      %p495 = scmp.ne.s32.totalorder %s478, %s494
      %p496 = scmp.eq.s32.totalorder %s40, 0
      %p497 = por %p495, %p496
      %p498 = scmp.le.s32.totalorder 1, %s34
      %p499 = scmp.lt.s32.totalorder %s34, 3
      %p500 = pnand %p498, %p499
      %p501 = pneg %p500
      // Predicated region
      $region9: #{tpu_custom_call.1} parent=5 // pred_check
        _
      $region10: #{tpu_custom_call.1} parent=5 // pred_check_branch
        %503 = sbr.rel (%p500) target = $region12
      $region11: #{tpu_custom_call.1} parent=5 // pred_region
        %s504 = ssub.s32 %s34, 1
        // Predicated region
        $region13: #{tpu_custom_call.1} parent=11 // pred_check
          %p505 = pneg %p107
        $region14: #{tpu_custom_call.1} parent=11 // pred_check_branch
          %507 = sbr.rel (%p505) target = $region16
        $region15: #{tpu_custom_call.1} parent=11 // pred_region
          _
        $region16: #{tpu_custom_call.1} parent=11 // pred_fallthru
          _
        // Predicated region
        $region17: #{tpu_custom_call.1} parent=11 // pred_check
          %p508 = pneg %p128
        $region18: #{tpu_custom_call.1} parent=11 // pred_check_branch
          %510 = sbr.rel (%p508) target = $region20
        $region19: #{tpu_custom_call.1} parent=11 // pred_region
          %512 = vsyncadd [#allocation6], 0
          %s514 = sshll.u32 %s3, 4
          %s515 = int_to_ptr.hbm [resolvable:$true] %s514
          %s516 = sshll.u32 [#allocation5], 4
          %s517 = int_to_ptr.vmem [resolvable:$true] %s516
          %519 = dma.hbm_to_vmem [thread:$0]  %s515, 16, %s517, [#allocation6]
        $region20: #{tpu_custom_call.1} parent=11 // pred_fallthru
          _
        // Predicated region
        $region21: #{tpu_custom_call.1} parent=11 // pred_check
          %p520 = pneg %p149
        $region22: #{tpu_custom_call.1} parent=11 // pred_check_branch
          %522 = sbr.rel (%p520) target = $region24
        $region23: #{tpu_custom_call.1} parent=11 // pred_region
          _
        $region24: #{tpu_custom_call.1} parent=11 // pred_fallthru
          _
        // Predicated region
        $region25: #{tpu_custom_call.1} parent=11 // pred_check
          %p523 = pneg %p170
        $region26: #{tpu_custom_call.1} parent=11 // pred_check_branch
          %525 = sbr.rel (%p523) target = $region28
        $region27: #{tpu_custom_call.1} parent=11 // pred_region
          _
        $region28: #{tpu_custom_call.1} parent=11 // pred_fallthru
          _
        // Predicated region
        $region29: #{tpu_custom_call.1} parent=11 // pred_check
          %p526 = pneg %p191
        $region30: #{tpu_custom_call.1} parent=11 // pred_check_branch
          %528 = sbr.rel (%p526) target = $region32
        $region31: #{tpu_custom_call.1} parent=11 // pred_region
          _
        $region32: #{tpu_custom_call.1} parent=11 // pred_fallthru
          _
        // Predicated region
        $region33: #{tpu_custom_call.1} parent=11 // pred_check
          %p529 = pneg %p212
        $region34: #{tpu_custom_call.1} parent=11 // pred_check_branch
          %531 = sbr.rel (%p529) target = $region36
        $region35: #{tpu_custom_call.1} parent=11 // pred_region
          _
        $region36: #{tpu_custom_call.1} parent=11 // pred_fallthru
          _
        // Predicated region
        $region37: #{tpu_custom_call.1} parent=11 // pred_check
          %p532 = pneg %p233
        $region38: #{tpu_custom_call.1} parent=11 // pred_check_branch
          %534 = sbr.rel (%p532) target = $region40
        $region39: #{tpu_custom_call.1} parent=11 // pred_region
          _
        $region40: #{tpu_custom_call.1} parent=11 // pred_fallthru
          _
        // Predicated region
        $region41: #{tpu_custom_call.1} parent=11 // pred_check
          %p535 = pneg %p254
        $region42: #{tpu_custom_call.1} parent=11 // pred_check_branch
          %537 = sbr.rel (%p535) target = $region44
        $region43: #{tpu_custom_call.1} parent=11 // pred_region
          %539 = vsyncadd [#allocation6], 0
          %s540 = sshll.u32 %s9, 4
          %s541 = int_to_ptr.hbm [resolvable:$true] %s540
          %s542 = sshll.u32 [#allocation7], 4
          %s543 = int_to_ptr.vmem [resolvable:$true] %s542
          %548 = dma.hbm_to_vmem [thread:$0]  %s541, 32, %s543, [#allocation6], 16, 16, 1
        $region44: #{tpu_custom_call.1} parent=11 // pred_fallthru
          _
        // Predicated region
        $region45: #{tpu_custom_call.1} parent=11 // pred_check
          %p549 = pneg %p275
        $region46: #{tpu_custom_call.1} parent=11 // pred_check_branch
          %551 = sbr.rel (%p549) target = $region48
        $region47: #{tpu_custom_call.1} parent=11 // pred_region
          _
        $region48: #{tpu_custom_call.1} parent=11 // pred_fallthru
          _
        // Predicated region
        $region49: #{tpu_custom_call.1} parent=11 // pred_check
          %p552 = pneg %p296
        $region50: #{tpu_custom_call.1} parent=11 // pred_check_branch
          %554 = sbr.rel (%p552) target = $region52
        $region51: #{tpu_custom_call.1} parent=11 // pred_region
          _
        $region52: #{tpu_custom_call.1} parent=11 // pred_fallthru
          _
        // Predicated region
        $region53: #{tpu_custom_call.1} parent=11 // pred_check
          %p555 = pneg %p317
        $region54: #{tpu_custom_call.1} parent=11 // pred_check_branch
          %557 = sbr.rel (%p555) target = $region56
        $region55: #{tpu_custom_call.1} parent=11 // pred_region
          _
        $region56: #{tpu_custom_call.1} parent=11 // pred_fallthru
          _
        // Predicated region
        $region57: #{tpu_custom_call.1} parent=11 // pred_check
          %p558 = pneg %p338
        $region58: #{tpu_custom_call.1} parent=11 // pred_check_branch
          %560 = sbr.rel (%p558) target = $region60
        $region59: #{tpu_custom_call.1} parent=11 // pred_region
          _
        $region60: #{tpu_custom_call.1} parent=11 // pred_fallthru
          _
        // Predicated region
        $region61: #{tpu_custom_call.1} parent=11 // pred_check
          %p561 = pneg %p359
        $region62: #{tpu_custom_call.1} parent=11 // pred_check_branch
          %563 = sbr.rel (%p561) target = $region64
        $region63: #{tpu_custom_call.1} parent=11 // pred_region
          _
        $region64: #{tpu_custom_call.1} parent=11 // pred_fallthru
          _
        // Predicated region
        $region65: #{tpu_custom_call.1} parent=11 // pred_check
          %p564 = pneg %p380
        $region66: #{tpu_custom_call.1} parent=11 // pred_check_branch
          %566 = sbr.rel (%p564) target = $region68
        $region67: #{tpu_custom_call.1} parent=11 // pred_region
          %568 = vsyncadd [#allocation9], 0
          %s569 = sshll.u32 %s15, 4
          %s570 = int_to_ptr.hbm [resolvable:$true] %s569
          %s571 = sshll.u32 [#allocation8], 4
          %s572 = int_to_ptr.vmem [resolvable:$true] %s571
          %577 = dma.hbm_to_vmem [thread:$0]  %s570, 32, %s572, [#allocation9], 16, 16, 1
        $region68: #{tpu_custom_call.1} parent=11 // pred_fallthru
          _
        // Predicated region
        $region69: #{tpu_custom_call.1} parent=11 // pred_check
          %p578 = pneg %p401
        $region70: #{tpu_custom_call.1} parent=11 // pred_check_branch
          %580 = sbr.rel (%p578) target = $region72
        $region71: #{tpu_custom_call.1} parent=11 // pred_region
          %582 = vsyncadd [#allocation9], 0
          %s583 = sshll.u32 %s16, 4
          %s584 = int_to_ptr.hbm [resolvable:$true] %s583
          %s585 = sshll.u32 [#allocation10], 4
          %s586 = int_to_ptr.vmem [resolvable:$true] %s585
          %591 = dma.hbm_to_vmem [thread:$0]  %s584, 256, %s586, [#allocation9], 64, 64, 4
        $region72: #{tpu_custom_call.1} parent=11 // pred_fallthru
          _
        // Predicated region
        $region73: #{tpu_custom_call.1} parent=11 // pred_check
          %p592 = pneg %p422
        $region74: #{tpu_custom_call.1} parent=11 // pred_check_branch
          %594 = sbr.rel (%p592) target = $region76
        $region75: #{tpu_custom_call.1} parent=11 // pred_region
          _
        $region76: #{tpu_custom_call.1} parent=11 // pred_fallthru
          _
        // Predicated region
        $region77: #{tpu_custom_call.1} parent=11 // pred_check
          %p595 = pneg %p443
        $region78: #{tpu_custom_call.1} parent=11 // pred_check_branch
          %597 = sbr.rel (%p595) target = $region80
        $region79: #{tpu_custom_call.1} parent=11 // pred_region
          _
        $region80: #{tpu_custom_call.1} parent=11 // pred_fallthru
          _
        // Predicated region
        $region81: #{tpu_custom_call.1} parent=11 // pred_check
          %p598 = pneg %p464
        $region82: #{tpu_custom_call.1} parent=11 // pred_check_branch
          %600 = sbr.rel (%p598) target = $region84
        $region83: #{tpu_custom_call.1} parent=11 // pred_region
          _
        $region84: #{tpu_custom_call.1} parent=11 // pred_fallthru
          _
      $region12: #{tpu_custom_call.1} parent=5 // pred_fallthru
        _
      %p601 = scmp.lt.s32.totalorder %s34, 2
      // Predicated region
      $region85: #{tpu_custom_call.1} parent=5 // pred_check
        %p602 = pneg %p601
      $region86: #{tpu_custom_call.1} parent=5 // pred_check_branch
        %604 = sbr.rel (%p602) target = $region88
      $region87: #{tpu_custom_call.1} parent=5 // pred_region
        // Predicated region
        $region89: #{tpu_custom_call.1} parent=87 // pred_check
          %p605 = pneg %p54
        $region90: #{tpu_custom_call.1} parent=87 // pred_check_branch
          %607 = sbr.rel (%p605) target = $region92
        $region91: #{tpu_custom_call.1} parent=87 // pred_region
          %p608 = scmp.lt.s32.totalorder %s34, 1
          %s609 = scalar_select %p608, %s34, 1
          %s610 = smul.addr %s609, 8
          %s611 = scalar_lea.vmem %s0, %s610
        $region92: #{tpu_custom_call.1} parent=87 // pred_fallthru
          _
        // Predicated region
        $region93: #{tpu_custom_call.1} parent=87 // pred_check
          %p612 = pneg %p80
        $region94: #{tpu_custom_call.1} parent=87 // pred_check_branch
          %614 = sbr.rel (%p612) target = $region96
        $region95: #{tpu_custom_call.1} parent=87 // pred_region
          %s615 = sand.u32 %s70, 1
          %s616 = scalar_lea.sflag [#allocation3], %s615
          %s617 = sand.u32 %s70, 1
          %s618 = scalar_lea.vmem [#allocation2], %s617
          %620 = vsyncadd %s616, 0
          %s621 = scalar_lea.hbm %s1, %s34
          %s623 = sshll.u32 %s621, 4
          %s624 = int_to_ptr.hbm [resolvable:$true] %s623
          %s625 = sshll.u32 %s618, 4
          %s626 = int_to_ptr.vmem [resolvable:$true] %s625
          %628 = dma.hbm_to_vmem [thread:$0]  %s624, 16, %s626, %s616
        $region96: #{tpu_custom_call.1} parent=87 // pred_fallthru
          _
      $region88: #{tpu_custom_call.1} parent=5 // pred_fallthru
        _
      %p629 = scmp.le.s32.totalorder 1, %s34
      %p630 = scmp.lt.s32.totalorder %s34, 3
      %p631 = pnand %p629, %p630
      %p632 = pneg %p631
      // Predicated region
      $region97: #{tpu_custom_call.1} parent=5 // pred_check
        _
      $region98: #{tpu_custom_call.1} parent=5 // pred_check_branch
        %634 = sbr.rel (%p631) target = $region100
      $region99: #{tpu_custom_call.1} parent=5 // pred_region
        %s635 = ssub.s32 %s34, 1
        %s636 = sand.u32 %s73, 1
        %s637 = scalar_lea.sflag [#allocation3], %s636
        %s638 = sand.u32 %s73, 1
        %s639 = scalar_lea.vmem [#allocation2], %s638
        // Predicated region
        $region101: #{tpu_custom_call.1} parent=99 // pred_check
          %p640 = pneg %p86
        $region102: #{tpu_custom_call.1} parent=99 // pred_check_branch
          %642 = sbr.rel (%p640) target = $region104
        $region103: #{tpu_custom_call.1} parent=99 // pred_region
          %644 = dma.done %s637, 16
        $region104: #{tpu_custom_call.1} parent=99 // pred_fallthru
          _
        // Predicated region
        $region105: #{tpu_custom_call.1} parent=99 // pred_check
          %p645 = pneg %p128
        $region106: #{tpu_custom_call.1} parent=99 // pred_check_branch
          %647 = sbr.rel (%p645) target = $region108
        $region107: #{tpu_custom_call.1} parent=99 // pred_region
          %649 = dma.done [#allocation6], 16
        $region108: #{tpu_custom_call.1} parent=99 // pred_fallthru
          _
        // Predicated region
        $region109: #{tpu_custom_call.1} parent=99 // pred_check
          %p650 = pneg %p254
        $region110: #{tpu_custom_call.1} parent=99 // pred_check_branch
          %652 = sbr.rel (%p650) target = $region112
        $region111: #{tpu_custom_call.1} parent=99 // pred_region
          %654 = dma.done [#allocation6], 32
        $region112: #{tpu_custom_call.1} parent=99 // pred_fallthru
          _
        // Predicated region
        $region113: #{tpu_custom_call.1} parent=99 // pred_check
          %p655 = pneg %p380
        $region114: #{tpu_custom_call.1} parent=99 // pred_check_branch
          %657 = sbr.rel (%p655) target = $region116
        $region115: #{tpu_custom_call.1} parent=99 // pred_region
          %659 = dma.done [#allocation9], 32
        $region116: #{tpu_custom_call.1} parent=99 // pred_fallthru
          _
        // Predicated region
        $region117: #{tpu_custom_call.1} parent=99 // pred_check
          %p660 = pneg %p401
        $region118: #{tpu_custom_call.1} parent=99 // pred_check_branch
          %662 = sbr.rel (%p660) target = $region120
        $region119: #{tpu_custom_call.1} parent=99 // pred_region
          %664 = dma.done [#allocation9], 256
        $region120: #{tpu_custom_call.1} parent=99 // pred_fallthru
          _
        %p665 = scmp.lt.s32.totalorder %s39, 1
        %s666 = scalar_select %p665, %s39, 1
        %s667 = smul.addr %s666, 8
        %s668 = scalar_lea.vmem %s0, %s667
        %p669 = pneg %p60
        %p670 = pneg %p57
        %s671 = sand.u32 %s73, 1
        %s672 = scalar_lea.sflag [#allocation3], %s671
        %s673 = sand.u32 %s73, 1
        %s674 = scalar_lea.vmem [#allocation2], %s673
        %p675 = pneg %p86
        %p676 = pneg %p83
        %p677 = pneg %p107
        %p678 = pneg %p104
        %p679 = pneg %p128
        %p680 = pneg %p125
        %p681 = pneg %p149
        %p682 = pneg %p146
        %p683 = pneg %p170
        %p684 = pneg %p167
        %p685 = pneg %p191
        %p686 = pneg %p188
        %p687 = pneg %p212
        %p688 = pneg %p209
        %p689 = pneg %p233
        %p690 = pneg %p230
        %p691 = pneg %p254
        %p692 = pneg %p251
        %p693 = pneg %p275
        %p694 = pneg %p272
        %p695 = pneg %p296
        %p696 = pneg %p293
        %p697 = pneg %p317
        %p698 = pneg %p314
        %p699 = pneg %p338
        %p700 = pneg %p335
        %p701 = pneg %p359
        %p702 = pneg %p356
        %p703 = pneg %p380
        %p704 = pneg %p377
        %p705 = pneg %p401
        %p706 = pneg %p398
        %p707 = pneg %p422
        %p708 = pneg %p419
        %p709 = pneg %p443
        %p710 = pneg %p440
        %p711 = pneg %p464
        %p712 = pneg %p461
        %p713 = pneg %p490
        %p714 = pneg %p487
        %s715 = sand.u32 %s477, 1
        %s716 = scalar_lea.sflag [#allocation4], %s715
        %s717 = sand.u32 %s477, 1
        %s718 = scalar_lea.vmem [#allocation11], %s717
        %p719 = scmp.lt.s32.totalorder %s39, 1
        %s720 = scalar_select %p719, %s39, 1
        %s721 = smul.addr %s720, 8
        %s722 = scalar_lea.vmem %s0, %s721
        %v724 = vld [vmem:[%s722] sm:$0xff]
        %v725 = vld [vmem:[%s2] sm:$0x1]
        %v726 = vld [vmem:[#allocation5] sm:$0x1]
        %vm727 = vcmask 261120
        %v728 = vsel %vm727, %v724, 0.0
        %729 = vadd.xlane.f32.xlu0 %v728
        %v730 = vpop.xlane.xlu0 %729
        %v731 = vrcp.pop 32.0
        %v732 = vmul.f32 32.0, %v731
        %v733 = vsub.f32 1.0, %v732
        %v734 = vmul.f32 %v731, %v733
        %v735 = vadd.f32 %v731, %v734
        %vm736 = vweird.f32 %v731
        %v737 = vsel %vm736, %v731, %v735
        %v738 = vmul.f32 %v730, %v737
        %v739 = vsub.f32 %v724, %v738
        %v740 = vmul.f32 %v739, %v739
        %v741 = vsel %vm727, %v740, 0.0
        %742 = vadd.xlane.f32.xlu0 %v741
        %v743 = vpop.xlane.xlu0 %742
        %v744 = vmul.f32 %v743, %v737
        %v745 = vadd.f32 %v744, 1e-12
        %v746 = vrsqrt.pop %v745
        %v747 = vmul.f32 %v746, %v745
        %v748 = vmul.f32 %v747, %v746
        %v749 = vmul.f32 0.5, %v748
        %v750 = vsub.f32 1.5, %v749
        %v751 = vmul.f32 %v746, %v750
        %vm752 = vweird.f32 %v745
        %vm753 = vweird.f32 %v746
        %vm754 = vmor %vm752, %vm753
        %v755 = vsel %vm754, %v746, %v751
        %v756 = vmul.f32 %v739, %v755
        %v758 = vperm.slane %v725, 0
        %v760 = vmul.f32 %v756, %v758
        %v762 = vperm.slane %v726, 0
        %v764 = vadd.f32 %v760, %v762
        %v765 = vld [vmem:[%s639] sm:$0x1]
        %v766 = vsub.f32 1.0, %v765
        %v767 = vmul.f32 %v766, -10000.0
        %v768 = vld [vmem:[%s4] sm:$0xf]
        %v769 = vld [vmem:[%s4 + $0x4] sm:$0xf]
        %v770 = vld [vmem:[%s4 + $0x8] sm:$0xf]
        %v771 = vld [vmem:[%s4 + $0xc] sm:$0xf]
        %v772 = vpack.c.bf16 %v764, %v764
        %v773 = vld [vmem:[%s5] sm:$0x1]
        %v775 = vperm.slane %v773, 0
        %v781 = vunpack.c.l.b16 %v768
        %v782 = vunpack.c.l.b16 %v769
        %v783 = vunpack.c.l.b16 %v770
        %v784 = vunpack.c.l.b16 %v771
        %v785 = vpack.c.b16 %v782, %v781
        %v786 = vpack.c.b16 %v784, %v783
        %v790 = vsel %vm727, %v772, 0
        %792 = vmatpush.bf16.msra.mxu0 0
        %793 = vmatpush.bf16.msra.mxu0 0
        %794 = vmatpush.bf16.msra.mxu0 0
        %795 = vmatpush.bf16.msra.mxu0 0
        %796 = vmatpush.bf16.msra.mxu0 0
        %797 = vmatpush.bf16.msra.mxu0 0
        %798 = vmatpush.bf16.msra.mxu0 %v786
        %799 = vmatpush.bf16.msra.mxu0 %v785
        %800 = vmatmul.bf16.gmra.mxu0 %v790
        %v801 = vpop.f32.mrf.mxu0
        %v802 = vadd.f32 %v775, %v801
        %v803 = vpop.f32.mrf.mxu0
        %804 = vdwg.mxu0
        %v805 = vld [vmem:[%s6] sm:$0xf]
        %v806 = vld [vmem:[%s6 + $0x4] sm:$0xf]
        %v807 = vld [vmem:[%s6 + $0x8] sm:$0xf]
        %v808 = vld [vmem:[%s6 + $0xc] sm:$0xf]
        %v809 = vpack.c.bf16 %v802, %v802
        %811 = vrot.lane.b32.xlu0 %v809, 96
        %v812 = vpop.permute.xlu0 %811
        %vm813 = vcmask 130048
        %v815 = vsel %vm813, %v809, 0
        %v818 = vsel %vm813, %v812, 0
        %820 = vmatpush.bf16.xpose.msra.mxu0 0
        %821 = vmatpush.bf16.xpose.msra.mxu0 0
        %822 = vmatpush.bf16.xpose.msra.mxu0 0
        %823 = vmatpush.bf16.xpose.msra.mxu0 0
        %824 = vmatpush.bf16.xpose.msra.mxu0 0
        %825 = vmatpush.bf16.xpose.msra.mxu0 0
        %826 = vmatpush.bf16.xpose.msra.mxu0 0
        %827 = vmatpush.bf16.xpose.msra.mxu0 %v818
        %828 = vmatmul.bf16.gmra.mxu0 %v815
        %v829 = vpop.f32.mrf.mxu0
        %v830 = vadd.f32 0.0, %v829
        %v831 = vpop.f32.mrf.mxu0
        %832 = vdwg.mxu0
        %v833 = vmul.f32 %v830, 0.25
        %v835 = vperm.slane %v767, 0
        %v837 = vadd.f32 %v833, %v835
        %vm838 = vcmask 64512
        %v839 = vsel %vm838, %v837, -inf
        %840 = vmax.xlane.f32.xlu0 %v839
        %v841 = vpop.xlane.xlu0 %840
        %v842 = vsub.f32 %v837, %v841
        %v843 = vmul.f32 %v842, 1.442695
        %v844 = vpow.pop %v843
        %v845 = vsel %vm838, %v844, 0.0
        %846 = vadd.xlane.f32.xlu0 %v845
        %v847 = vpop.xlane.xlu0 %846
        %v848 = vrcp.pop %v847
        %v849 = vmul.f32 %v844, %v848
        %v850 = vpack.c.bf16 %v849, %v849
        %851 = vrot.lane.b32.xlu0 %v809, 64
        %v852 = vpop.permute.xlu0 %851
        %v854 = vsel %vm838, %v850, 0
        %vm856 = vcmask 1043456
        %v858 = vsel %vm856, %v852, 0
        %860 = vmatpush.bf16.msra.mxu0 0
        %861 = vmatpush.bf16.msra.mxu0 0
        %862 = vmatpush.bf16.msra.mxu0 0
        %863 = vmatpush.bf16.msra.mxu0 0
        %864 = vmatpush.bf16.msra.mxu0 0
        %865 = vmatpush.bf16.msra.mxu0 0
        %866 = vmatpush.bf16.msra.mxu0 0
        %867 = vmatpush.bf16.msra.mxu0 %v858
        %868 = vmatmul.bf16.gmra.mxu0 %v854
        %v869 = vpop.f32.mrf.mxu0
        %v870 = vadd.f32 0.0, %v869
        %v871 = vpop.f32.mrf.mxu0
        %872 = vdwg.mxu0
        %v873 = vpack.c.bf16 %v870, %v870
        %874 = vrot.lane.b32.xlu0 %v809, 112
        %v875 = vpop.permute.xlu0 %874
        %876 = vrot.lane.b32.xlu0 %v809, 80
        %v877 = vpop.permute.xlu0 %876
        %v879 = vsel %vm813, %v875, 0
        %v882 = vsel %vm813, %v877, 0
        %884 = vmatpush.bf16.xpose.msra.mxu0 0
        %885 = vmatpush.bf16.xpose.msra.mxu0 0
        %886 = vmatpush.bf16.xpose.msra.mxu0 0
        %887 = vmatpush.bf16.xpose.msra.mxu0 0
        %888 = vmatpush.bf16.xpose.msra.mxu0 0
        %889 = vmatpush.bf16.xpose.msra.mxu0 0
        %890 = vmatpush.bf16.xpose.msra.mxu0 0
        %891 = vmatpush.bf16.xpose.msra.mxu0 %v882
        %892 = vmatmul.bf16.gmra.mxu0 %v879
        %v893 = vpop.f32.mrf.mxu0
        %v894 = vadd.f32 0.0, %v893
        %v895 = vpop.f32.mrf.mxu0
        %896 = vdwg.mxu0
        %v897 = vmul.f32 %v894, 0.25
        %v898 = vadd.f32 %v897, %v835
        %v899 = vsel %vm838, %v898, -inf
        %900 = vmax.xlane.f32.xlu0 %v899
        %v901 = vpop.xlane.xlu0 %900
        %v902 = vsub.f32 %v898, %v901
        %v903 = vmul.f32 %v902, 1.442695
        %v904 = vpow.pop %v903
        %v905 = vsel %vm838, %v904, 0.0
        %906 = vadd.xlane.f32.xlu0 %v905
        %v907 = vpop.xlane.xlu0 %906
        %v908 = vrcp.pop %v907
        %v909 = vmul.f32 %v904, %v908
        %v910 = vpack.c.bf16 %v909, %v909
        %911 = vrot.lane.b32.xlu0 %v809, 48
        %v912 = vpop.permute.xlu0 %911
        %v914 = vsel %vm838, %v910, 0
        %v917 = vsel %vm856, %v912, 0
        %919 = vmatpush.bf16.msra.mxu0 0
        %920 = vmatpush.bf16.msra.mxu0 0
        %921 = vmatpush.bf16.msra.mxu0 0
        %922 = vmatpush.bf16.msra.mxu0 0
        %923 = vmatpush.bf16.msra.mxu0 0
        %924 = vmatpush.bf16.msra.mxu0 0
        %925 = vmatpush.bf16.msra.mxu0 0
        %926 = vmatpush.bf16.msra.mxu0 %v917
        %927 = vmatmul.bf16.gmra.mxu0 %v914
        %v928 = vpop.f32.mrf.mxu0
        %v929 = vadd.f32 0.0, %v928
        %v930 = vpop.f32.mrf.mxu0
        %931 = vdwg.mxu0
        %v932 = vpack.c.bf16 %v929, %v929
        %v935 = vunpack.c.l.b16 %v807
        %v936 = vunpack.c.l.b16 %v808
        %v937 = vpack.c.b16 %v936, %v935
        %v940 = vsel %vm813, %v932, 0
        %942 = vmatpush.bf16.msra.mxu0 0
        %943 = vmatpush.bf16.msra.mxu0 0
        %944 = vmatpush.bf16.msra.mxu0 0
        %945 = vmatpush.bf16.msra.mxu0 0
        %946 = vmatpush.bf16.msra.mxu0 0
        %947 = vmatpush.bf16.msra.mxu0 0
        %948 = vmatpush.bf16.msra.mxu0 0
        %949 = vmatpush.bf16.msra.mxu0 %v937
        %950 = vmatmul.bf16.gmra.mxu0 %v940
        %v951 = vpop.f32.mrf.mxu0
        %v952 = vadd.f32 0.0, %v951
        %v953 = vpop.f32.mrf.mxu0
        %954 = vdwg.mxu0
        %v957 = vunpack.c.l.b16 %v805
        %v958 = vunpack.c.l.b16 %v806
        %v959 = vpack.c.b16 %v958, %v957
        %v962 = vsel %vm813, %v873, 0
        %964 = vmatpush.bf16.msra.mxu0 0
        %965 = vmatpush.bf16.msra.mxu0 0
        %966 = vmatpush.bf16.msra.mxu0 0
        %967 = vmatpush.bf16.msra.mxu0 0
        %968 = vmatpush.bf16.msra.mxu0 0
        %969 = vmatpush.bf16.msra.mxu0 0
        %970 = vmatpush.bf16.msra.mxu0 0
        %971 = vmatpush.bf16.msra.mxu0 %v959
        %972 = vmatmul.bf16.gmra.mxu0 %v962
        %v973 = vpop.f32.mrf.mxu0
        %v974 = vadd.f32 %v952, %v973
        %v975 = vpop.f32.mrf.mxu0
        %976 = vdwg.mxu0
        %v977 = vld [vmem:[%s7] sm:$0x1]
        %v979 = vperm.slane %v977, 0
        %v981 = vadd.f32 %v974, %v979
        %v982 = vadd.f32 %v981, %v764
        %v983 = vld [vmem:[%s8] sm:$0x1]
        %v984 = vld [vmem:[#allocation7] sm:$0x1]
        %v985 = vsel %vm727, %v982, 0.0
        %986 = vadd.xlane.f32.xlu0 %v985
        %v987 = vpop.xlane.xlu0 %986
        %v988 = vmul.f32 %v987, %v737
        %v989 = vsub.f32 %v982, %v988
        %v990 = vmul.f32 %v989, %v989
        %v991 = vsel %vm727, %v990, 0.0
        %992 = vadd.xlane.f32.xlu0 %v991
        %v993 = vpop.xlane.xlu0 %992
        %v994 = vmul.f32 %v993, %v737
        %v995 = vadd.f32 %v994, 1e-12
        %v996 = vrsqrt.pop %v995
        %v997 = vmul.f32 %v996, %v995
        %v998 = vmul.f32 %v997, %v996
        %v999 = vmul.f32 0.5, %v998
        %v1000 = vsub.f32 1.5, %v999
        %v1001 = vmul.f32 %v996, %v1000
        %vm1002 = vweird.f32 %v995
        %vm1003 = vweird.f32 %v996
        %vm1004 = vmor %vm1002, %vm1003
        %v1005 = vsel %vm1004, %v996, %v1001
        %v1006 = vmul.f32 %v989, %v1005
        %v1008 = vperm.slane %v983, 0
        %v1010 = vmul.f32 %v1006, %v1008
        %v1012 = vperm.slane %v984, 0
        %v1014 = vadd.f32 %v1010, %v1012
        %v1015 = vld [vmem:[%s10] sm:$0xf]
        %v1016 = vld [vmem:[%s10 + $0x4] sm:$0xf]
        %v1017 = vld [vmem:[%s10 + $0x8] sm:$0xf]
        %v1018 = vld [vmem:[%s10 + $0xc] sm:$0xf]
        %v1019 = vpack.c.bf16 %v1014, %v1014
        %v1020 = vld [vmem:[%s11] sm:$0x1]
        %v1022 = vperm.slane %v1020, 0
        %v1028 = vunpack.c.l.b16 %v1015
        %v1029 = vunpack.c.l.b16 %v1016
        %v1030 = vunpack.c.l.b16 %v1017
        %v1031 = vunpack.c.l.b16 %v1018
        %v1032 = vpack.c.b16 %v1029, %v1028
        %v1033 = vpack.c.b16 %v1031, %v1030
        %v1037 = vsel %vm727, %v1019, 0
        %1039 = vmatpush.bf16.msra.mxu0 0
        %1040 = vmatpush.bf16.msra.mxu0 0
        %1041 = vmatpush.bf16.msra.mxu0 0
        %1042 = vmatpush.bf16.msra.mxu0 0
        %1043 = vmatpush.bf16.msra.mxu0 0
        %1044 = vmatpush.bf16.msra.mxu0 0
        %1045 = vmatpush.bf16.msra.mxu0 %v1033
        %1046 = vmatpush.bf16.msra.mxu0 %v1032
        %1047 = vmatmul.bf16.gmra.mxu0 %v1037
        %v1048 = vpop.f32.mrf.mxu0
        %v1049 = vadd.f32 %v1022, %v1048
        %v1050 = vpop.f32.mrf.mxu0
        %1051 = vdwg.mxu0
        %v1052 = vmul.f32 %v1049, 0.5
        %v1053 = vmul.f32 %v1049, 0.70710677
        %v1054 = vmul.f32 %v1053, %v1053
        %v1055 = vmin.f32 16.0, %v1054
        %v1056 = vmul.f32 %v1055, 2.1237322e-06
        %v1057 = vadd.f32 %v1056, 0.00028619796
        %v1058 = vmul.f32 %v1055, %v1057
        %v1059 = vadd.f32 %v1058, 0.0036580483
        %v1060 = vmul.f32 %v1055, %v1059
        %v1061 = vadd.f32 %v1060, 0.05243302
        %v1062 = vmul.f32 %v1055, %v1061
        %v1063 = vadd.f32 %v1062, 0.18741608
        %v1064 = vmul.f32 %v1055, %v1063
        %v1065 = vadd.f32 %v1064, 1.1283791
        %v1066 = vmul.f32 %v1053, %v1065
        %v1067 = vmul.f32 %v1055, 3.8918573e-05
        %v1068 = vadd.f32 %v1067, 0.001143296
        %v1069 = vmul.f32 %v1055, %v1068
        %v1070 = vadd.f32 %v1069, 0.014752088
        %v1071 = vmul.f32 %v1055, %v1070
        %v1072 = vadd.f32 %v1071, 0.112945676
        %v1073 = vmul.f32 %v1055, %v1072
        %v1074 = vadd.f32 %v1073, 0.4994258
        %v1075 = vmul.f32 %v1055, %v1074
        %v1076 = vadd.f32 %v1075, 1.0
        %v1077 = vrcp.pop %v1076
        %v1078 = vmul.f32 %v1076, %v1077
        %v1079 = vsub.f32 1.0, %v1078
        %v1080 = vmul.f32 %v1077, %v1079
        %v1081 = vadd.f32 %v1077, %v1080
        %vm1082 = vweird.f32 %v1076
        %vm1083 = vweird.f32 %v1077
        %vm1084 = vmor %vm1082, %vm1083
        %v1085 = vsel %vm1084, %v1077, %v1081
        %v1086 = vand.u32 2147483647, %v1076
        %vm1087 = vcmp.eq.f32.partialorder %v1086, 8.507059e+37
        %v1088 = vand.u32 %v1076, 2147483648
        %v1089 = vor.u32 1.1754944e-38, %v1088
        %v1090 = vsel %vm1087, %v1089, %v1085
        %v1091 = vmul.f32 %v1066, %v1090
        %v1092 = vmin.f32 %v1091, 1.0
        %v1093 = vmax.f32 %v1092, -1.0
        %v1094 = vadd.f32 %v1093, 1.0
        %v1095 = vmul.f32 %v1052, %v1094
        %v1096 = vld [vmem:[%s12] sm:$0xf]
        %v1097 = vld [vmem:[%s12 + $0x4] sm:$0xf]
        %v1098 = vld [vmem:[%s12 + $0x8] sm:$0xf]
        %v1099 = vld [vmem:[%s12 + $0xc] sm:$0xf]
        %v1100 = vld [vmem:[%s12 + $0x10] sm:$0xf]
        %v1101 = vld [vmem:[%s12 + $0x14] sm:$0xf]
        %v1102 = vld [vmem:[%s12 + $0x18] sm:$0xf]
        %v1103 = vld [vmem:[%s12 + $0x1c] sm:$0xf]
        %v1104 = vpack.c.bf16 %v1095, %v1095
        %v1105 = vld [vmem:[%s13] sm:$0x1]
        %v1107 = vperm.slane %v1105, 0
        %v1117 = vunpack.c.l.b16 %v1096
        %v1118 = vunpack.c.l.b16 %v1097
        %v1119 = vunpack.c.l.b16 %v1098
        %v1120 = vunpack.c.l.b16 %v1099
        %v1121 = vunpack.c.l.b16 %v1100
        %v1122 = vunpack.c.l.b16 %v1101
        %v1123 = vunpack.c.l.b16 %v1102
        %v1124 = vunpack.c.l.b16 %v1103
        %v1125 = vpack.c.b16 %v1118, %v1117
        %v1126 = vpack.c.b16 %v1120, %v1119
        %v1127 = vpack.c.b16 %v1122, %v1121
        %v1128 = vpack.c.b16 %v1124, %v1123
        %vm1133 = vcmask 523264
        %v1135 = vsel %vm1133, %v1104, 0
        %1137 = vmatpush.bf16.msra.mxu0 0
        %1138 = vmatpush.bf16.msra.mxu0 0
        %1139 = vmatpush.bf16.msra.mxu0 0
        %1140 = vmatpush.bf16.msra.mxu0 0
        %1141 = vmatpush.bf16.msra.mxu0 %v1128
        %1142 = vmatpush.bf16.msra.mxu0 %v1127
        %1143 = vmatpush.bf16.msra.mxu0 %v1126
        %1144 = vmatpush.bf16.msra.mxu0 %v1125
        %1145 = vmatmul.bf16.gmra.mxu0 %v1135
        %v1146 = vpop.f32.mrf.mxu0
        %v1147 = vadd.f32 %v1107, %v1146
        %v1148 = vpop.f32.mrf.mxu0
        %1149 = vdwg.mxu0
        %v1150 = vadd.f32 %v1147, %v1014
        %v1151 = vld [vmem:[%s14] sm:$0x1]
        %v1152 = vld [vmem:[#allocation8] sm:$0x1]
        %v1153 = vsel %vm727, %v1150, 0.0
        %1154 = vadd.xlane.f32.xlu0 %v1153
        %v1155 = vpop.xlane.xlu0 %1154
        %v1156 = vmul.f32 %v1155, %v737
        %v1157 = vsub.f32 %v1150, %v1156
        %v1158 = vmul.f32 %v1157, %v1157
        %v1159 = vsel %vm727, %v1158, 0.0
        %1160 = vadd.xlane.f32.xlu0 %v1159
        %v1161 = vpop.xlane.xlu0 %1160
        %v1162 = vmul.f32 %v1161, %v737
        %v1163 = vadd.f32 %v1162, 1e-12
        %v1164 = vrsqrt.pop %v1163
        %v1165 = vmul.f32 %v1164, %v1163
        %v1166 = vmul.f32 %v1165, %v1164
        %v1167 = vmul.f32 0.5, %v1166
        %v1168 = vsub.f32 1.5, %v1167
        %v1169 = vmul.f32 %v1164, %v1168
        %vm1170 = vweird.f32 %v1163
        %vm1171 = vweird.f32 %v1164
        %vm1172 = vmor %vm1170, %vm1171
        %v1173 = vsel %vm1172, %v1164, %v1169
        %v1174 = vmul.f32 %v1157, %v1173
        %v1176 = vperm.slane %v1151, 0
        %v1178 = vmul.f32 %v1174, %v1176
        %v1180 = vperm.slane %v1152, 0
        %v1182 = vadd.f32 %v1178, %v1180
        %s1183 = scalar_lea.vmem %s4, 16
        %v1184 = vld [vmem:[%s1183] sm:$0xf]
        %v1185 = vld [vmem:[%s1183 + $0x4] sm:$0xf]
        %v1186 = vld [vmem:[%s1183 + $0x8] sm:$0xf]
        %v1187 = vld [vmem:[%s1183 + $0xc] sm:$0xf]
        %v1188 = vpack.c.bf16 %v1182, %v1182
        %s1189 = scalar_lea.vmem %s5, 1
        %v1190 = vld [vmem:[%s1189] sm:$0x1]
        %v1192 = vperm.slane %v1190, 0
        %v1198 = vunpack.c.l.b16 %v1184
        %v1199 = vunpack.c.l.b16 %v1185
        %v1200 = vunpack.c.l.b16 %v1186
        %v1201 = vunpack.c.l.b16 %v1187
        %v1202 = vpack.c.b16 %v1199, %v1198
        %v1203 = vpack.c.b16 %v1201, %v1200
        %v1207 = vsel %vm727, %v1188, 0
        %1209 = vmatpush.bf16.msra.mxu0 0
        %1210 = vmatpush.bf16.msra.mxu0 0
        %1211 = vmatpush.bf16.msra.mxu0 0
        %1212 = vmatpush.bf16.msra.mxu0 0
        %1213 = vmatpush.bf16.msra.mxu0 0
        %1214 = vmatpush.bf16.msra.mxu0 0
        %1215 = vmatpush.bf16.msra.mxu0 %v1203
        %1216 = vmatpush.bf16.msra.mxu0 %v1202
        %1217 = vmatmul.bf16.gmra.mxu0 %v1207
        %v1218 = vpop.f32.mrf.mxu0
        %v1219 = vadd.f32 %v1192, %v1218
        %v1220 = vpop.f32.mrf.mxu0
        %1221 = vdwg.mxu0
        %s1222 = scalar_lea.vmem %s6, 16
        %v1223 = vld [vmem:[%s1222] sm:$0xf]
        %v1224 = vld [vmem:[%s1222 + $0x4] sm:$0xf]
        %v1225 = vld [vmem:[%s1222 + $0x8] sm:$0xf]
        %v1226 = vld [vmem:[%s1222 + $0xc] sm:$0xf]
        %v1227 = vpack.c.bf16 %v1219, %v1219
        %1229 = vrot.lane.b32.xlu0 %v1227, 96
        %v1230 = vpop.permute.xlu0 %1229
        %v1232 = vsel %vm813, %v1227, 0
        %v1235 = vsel %vm813, %v1230, 0
        %1237 = vmatpush.bf16.xpose.msra.mxu0 0
        %1238 = vmatpush.bf16.xpose.msra.mxu0 0
        %1239 = vmatpush.bf16.xpose.msra.mxu0 0
        %1240 = vmatpush.bf16.xpose.msra.mxu0 0
        %1241 = vmatpush.bf16.xpose.msra.mxu0 0
        %1242 = vmatpush.bf16.xpose.msra.mxu0 0
        %1243 = vmatpush.bf16.xpose.msra.mxu0 0
        %1244 = vmatpush.bf16.xpose.msra.mxu0 %v1235
        %1245 = vmatmul.bf16.gmra.mxu0 %v1232
        %v1246 = vpop.f32.mrf.mxu0
        %v1247 = vadd.f32 0.0, %v1246
        %v1248 = vpop.f32.mrf.mxu0
        %1249 = vdwg.mxu0
        %v1250 = vmul.f32 %v1247, 0.25
        %v1251 = vadd.f32 %v1250, %v835
        %v1252 = vsel %vm838, %v1251, -inf
        %1253 = vmax.xlane.f32.xlu0 %v1252
        %v1254 = vpop.xlane.xlu0 %1253
        %v1255 = vsub.f32 %v1251, %v1254
        %v1256 = vmul.f32 %v1255, 1.442695
        %v1257 = vpow.pop %v1256
        %v1258 = vsel %vm838, %v1257, 0.0
        %1259 = vadd.xlane.f32.xlu0 %v1258
        %v1260 = vpop.xlane.xlu0 %1259
        %v1261 = vrcp.pop %v1260
        %v1262 = vmul.f32 %v1257, %v1261
        %v1263 = vpack.c.bf16 %v1262, %v1262
        %1264 = vrot.lane.b32.xlu0 %v1227, 64
        %v1265 = vpop.permute.xlu0 %1264
        %v1267 = vsel %vm838, %v1263, 0
        %v1270 = vsel %vm856, %v1265, 0
        %1272 = vmatpush.bf16.msra.mxu0 0
        %1273 = vmatpush.bf16.msra.mxu0 0
        %1274 = vmatpush.bf16.msra.mxu0 0
        %1275 = vmatpush.bf16.msra.mxu0 0
        %1276 = vmatpush.bf16.msra.mxu0 0
        %1277 = vmatpush.bf16.msra.mxu0 0
        %1278 = vmatpush.bf16.msra.mxu0 0
        %1279 = vmatpush.bf16.msra.mxu0 %v1270
        %1280 = vmatmul.bf16.gmra.mxu0 %v1267
        %v1281 = vpop.f32.mrf.mxu0
        %v1282 = vadd.f32 0.0, %v1281
        %v1283 = vpop.f32.mrf.mxu0
        %1284 = vdwg.mxu0
        %v1285 = vpack.c.bf16 %v1282, %v1282
        %1286 = vrot.lane.b32.xlu0 %v1227, 112
        %v1287 = vpop.permute.xlu0 %1286
        %1288 = vrot.lane.b32.xlu0 %v1227, 80
        %v1289 = vpop.permute.xlu0 %1288
        %v1291 = vsel %vm813, %v1287, 0
        %v1294 = vsel %vm813, %v1289, 0
        %1296 = vmatpush.bf16.xpose.msra.mxu0 0
        %1297 = vmatpush.bf16.xpose.msra.mxu0 0
        %1298 = vmatpush.bf16.xpose.msra.mxu0 0
        %1299 = vmatpush.bf16.xpose.msra.mxu0 0
        %1300 = vmatpush.bf16.xpose.msra.mxu0 0
        %1301 = vmatpush.bf16.xpose.msra.mxu0 0
        %1302 = vmatpush.bf16.xpose.msra.mxu0 0
        %1303 = vmatpush.bf16.xpose.msra.mxu0 %v1294
        %1304 = vmatmul.bf16.gmra.mxu0 %v1291
        %v1305 = vpop.f32.mrf.mxu0
        %v1306 = vadd.f32 0.0, %v1305
        %v1307 = vpop.f32.mrf.mxu0
        %1308 = vdwg.mxu0
        %v1309 = vmul.f32 %v1306, 0.25
        %v1310 = vadd.f32 %v1309, %v835
        %v1311 = vsel %vm838, %v1310, -inf
        %1312 = vmax.xlane.f32.xlu0 %v1311
        %v1313 = vpop.xlane.xlu0 %1312
        %v1314 = vsub.f32 %v1310, %v1313
        %v1315 = vmul.f32 %v1314, 1.442695
        %v1316 = vpow.pop %v1315
        %v1317 = vsel %vm838, %v1316, 0.0
        %1318 = vadd.xlane.f32.xlu0 %v1317
        %v1319 = vpop.xlane.xlu0 %1318
        %v1320 = vrcp.pop %v1319
        %v1321 = vmul.f32 %v1316, %v1320
        %v1322 = vpack.c.bf16 %v1321, %v1321
        %1323 = vrot.lane.b32.xlu0 %v1227, 48
        %v1324 = vpop.permute.xlu0 %1323
        %v1326 = vsel %vm838, %v1322, 0
        %v1329 = vsel %vm856, %v1324, 0
        %1331 = vmatpush.bf16.msra.mxu0 0
        %1332 = vmatpush.bf16.msra.mxu0 0
        %1333 = vmatpush.bf16.msra.mxu0 0
        %1334 = vmatpush.bf16.msra.mxu0 0
        %1335 = vmatpush.bf16.msra.mxu0 0
        %1336 = vmatpush.bf16.msra.mxu0 0
        %1337 = vmatpush.bf16.msra.mxu0 0
        %1338 = vmatpush.bf16.msra.mxu0 %v1329
        %1339 = vmatmul.bf16.gmra.mxu0 %v1326
        %v1340 = vpop.f32.mrf.mxu0
        %v1341 = vadd.f32 0.0, %v1340
        %v1342 = vpop.f32.mrf.mxu0
        %1343 = vdwg.mxu0
        %v1344 = vpack.c.bf16 %v1341, %v1341
        %v1347 = vunpack.c.l.b16 %v1225
        %v1348 = vunpack.c.l.b16 %v1226
        %v1349 = vpack.c.b16 %v1348, %v1347
        %v1352 = vsel %vm813, %v1344, 0
        %1354 = vmatpush.bf16.msra.mxu0 0
        %1355 = vmatpush.bf16.msra.mxu0 0
        %1356 = vmatpush.bf16.msra.mxu0 0
        %1357 = vmatpush.bf16.msra.mxu0 0
        %1358 = vmatpush.bf16.msra.mxu0 0
        %1359 = vmatpush.bf16.msra.mxu0 0
        %1360 = vmatpush.bf16.msra.mxu0 0
        %1361 = vmatpush.bf16.msra.mxu0 %v1349
        %1362 = vmatmul.bf16.gmra.mxu0 %v1352
        %v1363 = vpop.f32.mrf.mxu0
        %v1364 = vadd.f32 0.0, %v1363
        %v1365 = vpop.f32.mrf.mxu0
        %1366 = vdwg.mxu0
        %v1369 = vunpack.c.l.b16 %v1223
        %v1370 = vunpack.c.l.b16 %v1224
        %v1371 = vpack.c.b16 %v1370, %v1369
        %v1374 = vsel %vm813, %v1285, 0
        %1376 = vmatpush.bf16.msra.mxu0 0
        %1377 = vmatpush.bf16.msra.mxu0 0
        %1378 = vmatpush.bf16.msra.mxu0 0
        %1379 = vmatpush.bf16.msra.mxu0 0
        %1380 = vmatpush.bf16.msra.mxu0 0
        %1381 = vmatpush.bf16.msra.mxu0 0
        %1382 = vmatpush.bf16.msra.mxu0 0
        %1383 = vmatpush.bf16.msra.mxu0 %v1371
        %1384 = vmatmul.bf16.gmra.mxu0 %v1374
        %v1385 = vpop.f32.mrf.mxu0
        %v1386 = vadd.f32 %v1364, %v1385
        %v1387 = vpop.f32.mrf.mxu0
        %1388 = vdwg.mxu0
        %s1389 = scalar_lea.vmem %s7, 1
        %v1390 = vld [vmem:[%s1389] sm:$0x1]
        %v1392 = vperm.slane %v1390, 0
        %v1394 = vadd.f32 %v1386, %v1392
        %v1395 = vadd.f32 %v1394, %v1182
        %s1396 = scalar_lea.vmem %s8, 1
        %v1397 = vld [vmem:[%s1396] sm:$0x1]
        %s1398 = scalar_lea.vmem [#allocation7], 1
        %v1399 = vld [vmem:[%s1398] sm:$0x1]
        %v1400 = vsel %vm727, %v1395, 0.0
        %1401 = vadd.xlane.f32.xlu0 %v1400
        %v1402 = vpop.xlane.xlu0 %1401
        %v1403 = vmul.f32 %v1402, %v737
        %v1404 = vsub.f32 %v1395, %v1403
        %v1405 = vmul.f32 %v1404, %v1404
        %v1406 = vsel %vm727, %v1405, 0.0
        %1407 = vadd.xlane.f32.xlu0 %v1406
        %v1408 = vpop.xlane.xlu0 %1407
        %v1409 = vmul.f32 %v1408, %v737
        %v1410 = vadd.f32 %v1409, 1e-12
        %v1411 = vrsqrt.pop %v1410
        %v1412 = vmul.f32 %v1411, %v1410
        %v1413 = vmul.f32 %v1412, %v1411
        %v1414 = vmul.f32 0.5, %v1413
        %v1415 = vsub.f32 1.5, %v1414
        %v1416 = vmul.f32 %v1411, %v1415
        %vm1417 = vweird.f32 %v1410
        %vm1418 = vweird.f32 %v1411
        %vm1419 = vmor %vm1417, %vm1418
        %v1420 = vsel %vm1419, %v1411, %v1416
        %v1421 = vmul.f32 %v1404, %v1420
        %v1423 = vperm.slane %v1397, 0
        %v1425 = vmul.f32 %v1421, %v1423
        %v1427 = vperm.slane %v1399, 0
        %v1429 = vadd.f32 %v1425, %v1427
        %s1430 = scalar_lea.vmem %s10, 16
        %v1431 = vld [vmem:[%s1430] sm:$0xf]
        %v1432 = vld [vmem:[%s1430 + $0x4] sm:$0xf]
        %v1433 = vld [vmem:[%s1430 + $0x8] sm:$0xf]
        %v1434 = vld [vmem:[%s1430 + $0xc] sm:$0xf]
        %v1435 = vpack.c.bf16 %v1429, %v1429
        %s1436 = scalar_lea.vmem %s11, 1
        %v1437 = vld [vmem:[%s1436] sm:$0x1]
        %v1439 = vperm.slane %v1437, 0
        %v1445 = vunpack.c.l.b16 %v1431
        %v1446 = vunpack.c.l.b16 %v1432
        %v1447 = vunpack.c.l.b16 %v1433
        %v1448 = vunpack.c.l.b16 %v1434
        %v1449 = vpack.c.b16 %v1446, %v1445
        %v1450 = vpack.c.b16 %v1448, %v1447
        %v1454 = vsel %vm727, %v1435, 0
        %1456 = vmatpush.bf16.msra.mxu0 0
        %1457 = vmatpush.bf16.msra.mxu0 0
        %1458 = vmatpush.bf16.msra.mxu0 0
        %1459 = vmatpush.bf16.msra.mxu0 0
        %1460 = vmatpush.bf16.msra.mxu0 0
        %1461 = vmatpush.bf16.msra.mxu0 0
        %1462 = vmatpush.bf16.msra.mxu0 %v1450
        %1463 = vmatpush.bf16.msra.mxu0 %v1449
        %1464 = vmatmul.bf16.gmra.mxu0 %v1454
        %v1465 = vpop.f32.mrf.mxu0
        %v1466 = vadd.f32 %v1439, %v1465
        %v1467 = vpop.f32.mrf.mxu0
        %1468 = vdwg.mxu0
        %v1469 = vmul.f32 %v1466, 0.5
        %v1470 = vmul.f32 %v1466, 0.70710677
        %v1471 = vmul.f32 %v1470, %v1470
        %v1472 = vmin.f32 16.0, %v1471
        %v1473 = vmul.f32 %v1472, 2.1237322e-06
        %v1474 = vadd.f32 %v1473, 0.00028619796
        %v1475 = vmul.f32 %v1472, %v1474
        %v1476 = vadd.f32 %v1475, 0.0036580483
        %v1477 = vmul.f32 %v1472, %v1476
        %v1478 = vadd.f32 %v1477, 0.05243302
        %v1479 = vmul.f32 %v1472, %v1478
        %v1480 = vadd.f32 %v1479, 0.18741608
        %v1481 = vmul.f32 %v1472, %v1480
        %v1482 = vadd.f32 %v1481, 1.1283791
        %v1483 = vmul.f32 %v1470, %v1482
        %v1484 = vmul.f32 %v1472, 3.8918573e-05
        %v1485 = vadd.f32 %v1484, 0.001143296
        %v1486 = vmul.f32 %v1472, %v1485
        %v1487 = vadd.f32 %v1486, 0.014752088
        %v1488 = vmul.f32 %v1472, %v1487
        %v1489 = vadd.f32 %v1488, 0.112945676
        %v1490 = vmul.f32 %v1472, %v1489
        %v1491 = vadd.f32 %v1490, 0.4994258
        %v1492 = vmul.f32 %v1472, %v1491
        %v1493 = vadd.f32 %v1492, 1.0
        %v1494 = vrcp.pop %v1493
        %v1495 = vmul.f32 %v1493, %v1494
        %v1496 = vsub.f32 1.0, %v1495
        %v1497 = vmul.f32 %v1494, %v1496
        %v1498 = vadd.f32 %v1494, %v1497
        %vm1499 = vweird.f32 %v1493
        %vm1500 = vweird.f32 %v1494
        %vm1501 = vmor %vm1499, %vm1500
        %v1502 = vsel %vm1501, %v1494, %v1498
        %v1503 = vand.u32 2147483647, %v1493
        %vm1504 = vcmp.eq.f32.partialorder %v1503, 8.507059e+37
        %v1505 = vand.u32 %v1493, 2147483648
        %v1506 = vor.u32 1.1754944e-38, %v1505
        %v1507 = vsel %vm1504, %v1506, %v1502
        %v1508 = vmul.f32 %v1483, %v1507
        %v1509 = vmin.f32 %v1508, 1.0
        %v1510 = vmax.f32 %v1509, -1.0
        %v1511 = vadd.f32 %v1510, 1.0
        %v1512 = vmul.f32 %v1469, %v1511
        %s1513 = scalar_lea.vmem %s12, 32
        %v1514 = vld [vmem:[%s1513] sm:$0xf]
        %v1515 = vld [vmem:[%s1513 + $0x4] sm:$0xf]
        %v1516 = vld [vmem:[%s1513 + $0x8] sm:$0xf]
        %v1517 = vld [vmem:[%s1513 + $0xc] sm:$0xf]
        %v1518 = vld [vmem:[%s1513 + $0x10] sm:$0xf]
        %v1519 = vld [vmem:[%s1513 + $0x14] sm:$0xf]
        %v1520 = vld [vmem:[%s1513 + $0x18] sm:$0xf]
        %v1521 = vld [vmem:[%s1513 + $0x1c] sm:$0xf]
        %v1522 = vpack.c.bf16 %v1512, %v1512
        %s1523 = scalar_lea.vmem %s13, 1
        %v1524 = vld [vmem:[%s1523] sm:$0x1]
        %v1526 = vperm.slane %v1524, 0
        %v1536 = vunpack.c.l.b16 %v1514
        %v1537 = vunpack.c.l.b16 %v1515
        %v1538 = vunpack.c.l.b16 %v1516
        %v1539 = vunpack.c.l.b16 %v1517
        %v1540 = vunpack.c.l.b16 %v1518
        %v1541 = vunpack.c.l.b16 %v1519
        %v1542 = vunpack.c.l.b16 %v1520
        %v1543 = vunpack.c.l.b16 %v1521
        %v1544 = vpack.c.b16 %v1537, %v1536
        %v1545 = vpack.c.b16 %v1539, %v1538
        %v1546 = vpack.c.b16 %v1541, %v1540
        %v1547 = vpack.c.b16 %v1543, %v1542
        %v1553 = vsel %vm1133, %v1522, 0
        %1555 = vmatpush.bf16.msra.mxu0 0
        %1556 = vmatpush.bf16.msra.mxu0 0
        %1557 = vmatpush.bf16.msra.mxu0 0
        %1558 = vmatpush.bf16.msra.mxu0 0
        %1559 = vmatpush.bf16.msra.mxu0 %v1547
        %1560 = vmatpush.bf16.msra.mxu0 %v1546
        %1561 = vmatpush.bf16.msra.mxu0 %v1545
        %1562 = vmatpush.bf16.msra.mxu0 %v1544
        %1563 = vmatmul.bf16.gmra.mxu0 %v1553
        %v1564 = vpop.f32.mrf.mxu0
        %v1565 = vadd.f32 %v1526, %v1564
        %v1566 = vpop.f32.mrf.mxu0
        %1567 = vdwg.mxu0
        %v1568 = vadd.f32 %v1565, %v1429
        %s1569 = scalar_lea.vmem %s14, 1
        %v1570 = vld [vmem:[%s1569] sm:$0x1]
        %s1571 = scalar_lea.vmem [#allocation8], 1
        %v1572 = vld [vmem:[%s1571] sm:$0x1]
        %v1573 = vsel %vm727, %v1568, 0.0
        %1574 = vadd.xlane.f32.xlu0 %v1573
        %v1575 = vpop.xlane.xlu0 %1574
        %v1576 = vmul.f32 %v1575, %v737
        %v1577 = vsub.f32 %v1568, %v1576
        %v1578 = vmul.f32 %v1577, %v1577
        %v1579 = vsel %vm727, %v1578, 0.0
        %1580 = vadd.xlane.f32.xlu0 %v1579
        %v1581 = vpop.xlane.xlu0 %1580
        %v1582 = vmul.f32 %v1581, %v737
        %v1583 = vadd.f32 %v1582, 1e-12
        %v1584 = vrsqrt.pop %v1583
        %v1585 = vmul.f32 %v1584, %v1583
        %v1586 = vmul.f32 %v1585, %v1584
        %v1587 = vmul.f32 0.5, %v1586
        %v1588 = vsub.f32 1.5, %v1587
        %v1589 = vmul.f32 %v1584, %v1588
        %vm1590 = vweird.f32 %v1583
        %vm1591 = vweird.f32 %v1584
        %vm1592 = vmor %vm1590, %vm1591
        %v1593 = vsel %vm1592, %v1584, %v1589
        %v1594 = vmul.f32 %v1577, %v1593
        %v1596 = vperm.slane %v1570, 0
        %v1598 = vmul.f32 %v1594, %v1596
        %v1600 = vperm.slane %v1572, 0
        %v1602 = vadd.f32 %v1598, %v1600
        %v1603 = vld [vmem:[#allocation10] sm:$0xf]
        %v1604 = vld [vmem:[#allocation10 + $0x4] sm:$0xf]
        %v1605 = vld [vmem:[#allocation10 + $0x8] sm:$0xf]
        %v1606 = vld [vmem:[#allocation10 + $0xc] sm:$0xf]
        %v1607 = vpack.c.bf16 %v1602, %v1602
        %v1608 = vld [vmem:[%s17] sm:$0x1]
        %v1613 = vunpack.c.l.b16 %v1603
        %v1614 = vunpack.c.l.b16 %v1604
        %v1615 = vunpack.c.l.b16 %v1605
        %v1616 = vunpack.c.l.b16 %v1606
        %v1617 = vpack.c.b16 %v1614, %v1613
        %v1618 = vpack.c.b16 %v1616, %v1615
        %v1622 = vsel %vm727, %v1607, 0
        %1624 = vmatpush.bf16.msra.mxu0 0
        %1625 = vmatpush.bf16.msra.mxu0 0
        %1626 = vmatpush.bf16.msra.mxu0 0
        %1627 = vmatpush.bf16.msra.mxu0 0
        %1628 = vmatpush.bf16.msra.mxu0 0
        %1629 = vmatpush.bf16.msra.mxu0 0
        %1630 = vmatpush.bf16.msra.mxu0 %v1618
        %1631 = vmatpush.bf16.msra.mxu0 %v1617
        %1632 = vmatmul.bf16.gmra.mxu0 %v1622
        %v1633 = vpop.f32.mrf.mxu0
        %v1634 = vadd.f32 %v1608, %v1633
        %v1635 = vpop.f32.mrf.mxu0
        %1636 = vdwg.mxu0
        %v1637 = vtanh.pop %v1634
        %v1638 = vld [vmem:[%s18] sm:$0xf]
        %v1639 = vld [vmem:[%s18 + $0x4] sm:$0xf]
        %v1640 = vld [vmem:[%s18 + $0x8] sm:$0xf]
        %v1641 = vld [vmem:[%s18 + $0xc] sm:$0xf]
        %v1642 = vpack.c.bf16 %v1637, %v1637
        %v1643 = vld [vmem:[%s19] sm:$0x1]
        %v1648 = vunpack.c.l.b16 %v1638
        %v1649 = vunpack.c.l.b16 %v1639
        %v1650 = vunpack.c.l.b16 %v1640
        %v1651 = vunpack.c.l.b16 %v1641
        %v1652 = vpack.c.b16 %v1649, %v1648
        %v1653 = vpack.c.b16 %v1651, %v1650
        %v1657 = vsel %vm727, %v1642, 0
        %1659 = vmatpush.bf16.msra.mxu0 0
        %1660 = vmatpush.bf16.msra.mxu0 0
        %1661 = vmatpush.bf16.msra.mxu0 0
        %1662 = vmatpush.bf16.msra.mxu0 0
        %1663 = vmatpush.bf16.msra.mxu0 0
        %1664 = vmatpush.bf16.msra.mxu0 0
        %1665 = vmatpush.bf16.msra.mxu0 %v1653
        %1666 = vmatpush.bf16.msra.mxu0 %v1652
        %1667 = vmatmul.bf16.gmra.mxu0 %v1657
        %v1668 = vpop.f32.mrf.mxu0
        %v1669 = vadd.f32 %v1643, %v1668
        %v1670 = vpop.f32.mrf.mxu0
        %1671 = vdwg.mxu0
        %vm1672 = vcmask 8192
        %1673 = vst.msk [vmem:[%s718] sm:$0x1] %vm1672, %v1669
        %s1674 = sand.u32 %s477, 1
        %s1675 = scalar_lea.sflag [#allocation4], %s1674
        %s1676 = sand.u32 %s477, 1
        %s1677 = scalar_lea.vmem [#allocation11], %s1676
        // Predicated region
        $region121: #{tpu_custom_call.1} parent=99 // pred_check
          %p1678 = pneg %p487
        $region122: #{tpu_custom_call.1} parent=99 // pred_check_branch
          %1680 = sbr.rel (%p1678) target = $region124
        $region123: #{tpu_custom_call.1} parent=99 // pred_region
          %1682 = vsyncadd %s1675, 0
          %s1683 = scalar_lea.hbm %s20, %s39
          %s1685 = sshll.u32 %s1677, 4
          %s1686 = int_to_ptr.vmem [resolvable:$true] %s1685
          %s1687 = sshll.u32 %s1683, 4
          %s1688 = int_to_ptr.hbm [resolvable:$true] %s1687
          %1690 = dma.vmem_to_hbm [thread:$0]  %s1686, 16, %s1688, %s1675
        $region124: #{tpu_custom_call.1} parent=99 // pred_fallthru
          _
      $region100: #{tpu_custom_call.1} parent=5 // pred_fallthru
        _
      %p1691 = scmp.le.s32.totalorder 2, %s34
      // Predicated region
      $region125: #{tpu_custom_call.1} parent=5 // pred_check
        %p1692 = pneg %p1691
      $region126: #{tpu_custom_call.1} parent=5 // pred_check_branch
        %1694 = sbr.rel (%p1692) target = $region128
      $region127: #{tpu_custom_call.1} parent=5 // pred_region
        %s1695 = ssub.s32 %s34, 2
        // Predicated region
        $region129: #{tpu_custom_call.1} parent=127 // pred_check
          %p1696 = pneg %p493
        $region130: #{tpu_custom_call.1} parent=127 // pred_check_branch
          %1698 = sbr.rel (%p1696) target = $region132
        $region131: #{tpu_custom_call.1} parent=127 // pred_region
          %s1699 = sand.u32 %s478, 1
          %s1700 = scalar_lea.sflag [#allocation4], %s1699
          %s1701 = sand.u32 %s478, 1
          %s1702 = scalar_lea.vmem [#allocation11], %s1701
          %1704 = dma.done %s1700, 16
        $region132: #{tpu_custom_call.1} parent=127 // pred_fallthru
          _
      $region128: #{tpu_custom_call.1} parent=5 // pred_fallthru
        _
    $region6: #{tpu_custom_call.1} parent=1 // loop_footer
      %s38 = sadd.s32 1, %s34
    $region7: #{tpu_custom_call.1} parent=1 // loop_footer_branch
      %33 = sbr.rel target = $region3
    $region8: #{tpu_custom_call.1} parent=1 // loop_exit
      _
    %1705 = vsyncpa [#allocation3], 1
    %s1706 = scalar_lea.sflag [#allocation3], 1
    %1707 = vsyncpa %s1706, 1
    %1708 = vsyncpa [#allocation6], 1
    %1709 = vsyncpa [#allocation9], 1
    %1710 = vsyncpa [#allocation4], 1
    %s1711 = scalar_lea.sflag [#allocation4], 1
    %1712 = vsyncpa %s1711, 1

</llo_original>
